<compile_context>
chip_gen: v5e
topology: v5e:2x2
jax: 0.10.0
libtpu: 0.0.40
codegen_flags: <defaults>
</compile_context>

<pallas_src>
import functools

import jax
import jax.numpy as jnp
import numpy as np
from jax.experimental import pallas as pl
from jax.experimental.pallas import tpu as pltpu

BN_EPS = 1e-5
LANES = 128
FC_K_PAD = 512          # 400 real classifier features, padded to 4 lane blocks
NEG_INF = -1e30


# ----------------------------------------------------------------------------
# Pallas kernels
# ----------------------------------------------------------------------------
def _conv_pool_kernel(cols_ref, w_ref, b_ref, o_ref):
    """Fused conv (as matmul, BN scale pre-folded) + bias + ReLU + 2x2 max-pool.

    cols_ref : (R, K)      bf16  im2col rows, one per *pooled* output pixel
    w_ref    : (K, 4*128)  bf16  four column blocks = four pool-window offsets
    b_ref    : (1, 4*128)  f32   folded BN + conv bias (tiled over the blocks)
    o_ref    : (R, 128)    bf16  pooled activations, channels in lanes
    """
    y = jnp.dot(cols_ref[...], w_ref[...], preferred_element_type=jnp.float32)
    y = jnp.maximum(y + b_ref[...], 0.0)          # BN+bias affine, then ReLU
    p = jnp.maximum(
        jnp.maximum(y[:, 0 * LANES:1 * LANES], y[:, 1 * LANES:2 * LANES]),
        jnp.maximum(y[:, 2 * LANES:3 * LANES], y[:, 3 * LANES:4 * LANES]),
    )
    o_ref[...] = p.astype(o_ref.dtype)


def _fc_head_kernel(h_ref, w1_ref, b1_ref, w2_ref, b2_ref, w3_ref, b3_ref,
                    o_ref):
    """fc(400->120)+ReLU -> fc1(120->84)+ReLU -> fc2(84->C) -> softmax.

    Weights are zero-padded to 128 lanes; padded logits carry a -1e30 bias so
    the softmax ignores them.  Matmuls are bf16 x bf16 -> f32; epilogue f32.
    """
    y = jnp.dot(h_ref[...], w1_ref[...], preferred_element_type=jnp.float32)
    y = jnp.maximum(y + b1_ref[...], 0.0)
    y = jnp.dot(y.astype(jnp.bfloat16), w2_ref[...],
                preferred_element_type=jnp.float32)
    y = jnp.maximum(y + b2_ref[...], 0.0)
    y = jnp.dot(y.astype(jnp.bfloat16), w3_ref[...],
                preferred_element_type=jnp.float32)
    y = y + b3_ref[...]
    y = y - jnp.max(y, axis=-1, keepdims=True)
    e = jnp.exp(y)
    denom = jnp.sum(e, axis=-1, keepdims=True)
    o_ref[...] = (e * pl.reciprocal(denom, approx=True)).astype(o_ref.dtype)


# ----------------------------------------------------------------------------
# Pallas wrappers
# ----------------------------------------------------------------------------
def conv_pool(cols, w, b):
    """cols: (N, R, K) bf16 -> (N, R, 128) bf16 pooled activations."""
    N, R, K = cols.shape
    return pl.pallas_call(
        _conv_pool_kernel,
        out_shape=jax.ShapeDtypeStruct((N, R, LANES), jnp.bfloat16),
        grid=(N,),
        in_specs=[
            pl.BlockSpec((None, R, K), lambda n: (n, 0, 0)),
            pl.BlockSpec((K, 4 * LANES), lambda n: (0, 0)),
            pl.BlockSpec((1, 4 * LANES), lambda n: (0, 0)),
        ],
        out_specs=pl.BlockSpec((None, R, LANES), lambda n: (n, 0, 0)),
        compiler_params=pltpu.CompilerParams(
            dimension_semantics=("parallel",)),   # one image per TensorCore
    )(cols, w, b)


def fc_head(h, w1, b1, w2, b2, w3, b3):
    """h: (N, 512) bf16 -> (N, 128) f32 softmax probabilities (lane-padded)."""
    N = h.shape[0]
    return pl.pallas_call(
        _fc_head_kernel,
        out_shape=jax.ShapeDtypeStruct((N, LANES), jnp.float32),
        in_specs=[pl.BlockSpec(memory_space=pltpu.MemorySpace.VMEM)] * 7,
        out_specs=pl.BlockSpec(memory_space=pltpu.MemorySpace.VMEM),
    )(h, w1, b1, w2, b2, w3, b3)


# ----------------------------------------------------------------------------
# Host-side operand packing (im2col + weight packing), all tiny XLA ops
# ----------------------------------------------------------------------------
def _im2col_pooled(x, *, out_hw, k_pad, r_pad):
    """x: (N, H, W, C) channels-last.

    One row per 2x2-pooled output pixel of a 5x5 VALID conv; each row is the
    flattened 6x6xC input patch covering the pool window (column index
    (u*6+v)*C + c), zero-padded to k_pad columns and r_pad rows.
    """
    N = x.shape[0]
    C = x.shape[3]
    slabs = []
    for u in range(6):
        for v in range(6):
            slabs.append(x[:, u:u + 2 * out_hw - 1:2, v:v + 2 * out_hw - 1:2, :])
    cols = jnp.stack(slabs, axis=3)                     # (N, oh, ow, 36, C)
    cols = cols.reshape(N, out_hw * out_hw, 36 * C)
    cols = jnp.pad(cols, ((0, 0), (0, r_pad - out_hw * out_hw),
                          (0, k_pad - 36 * C)))
    return cols.astype(jnp.bfloat16)


def _fold_bn(conv_b, bn):
    """Eval-mode BatchNorm + conv bias -> per-channel (scale, bias)."""
    gamma, beta, mean, var = bn
    s = gamma / jnp.sqrt(var + BN_EPS)
    b = (conv_b - mean) * s + beta
    return s, b


def _pack_conv_weight(w, scale, *, k_pad):
    """w: (OC, C, 5, 5), scale: (OC,) -> (k_pad, 4*128) bf16.

    The BN per-channel scale is folded into the weight.  Column block (dy, dx)
    produces the conv output at pool-window offset (dy, dx) from the flattened
    6x6xC patch.
    """
    OC, C = w.shape[0], w.shape[1]
    wt = jnp.transpose(w, (2, 3, 1, 0)) * scale[None, None, None, :]  # (5,5,C,OC)
    blocks = []
    for dy in range(2):
        for dx in range(2):
            canvas = jnp.zeros((6, 6, C, OC), jnp.float32)
            canvas = canvas.at[dy:dy + 5, dx:dx + 5].set(wt)
            m = canvas.reshape(36 * C, OC)
            m = jnp.pad(m, ((0, k_pad - 36 * C), (0, LANES - OC)))
            blocks.append(m)
    return jnp.concatenate(blocks, axis=1).astype(jnp.bfloat16)


def _pack_conv_bias(b):
    """Per-channel bias -> (1, 4*128) f32, tiled over the 4 pool-offset blocks."""
    bp = jnp.pad(b, (0, LANES - b.shape[0]))
    return jnp.tile(bp, 4)[None, :].astype(jnp.float32)


def pack_params(params, num_classes):
    assert num_classes <= LANES
    s1, b1 = _fold_bn(params["conv1_b"], params["bn1"])
    s2, b2 = _fold_bn(params["conv2_b"], params["bn2"])
    w1 = _pack_conv_weight(params["conv1_w"], s1, k_pad=LANES)        # (128, 512)
    w2 = _pack_conv_weight(params["conv2_w"], s2, k_pad=2 * LANES)    # (256, 512)

    # The fc layer consumes the PyTorch flatten of (N, 16, 5, 5) (index =
    # c*25 + p).  The runtime activation is the compacted (p*16 + c) layout,
    # so fold that permutation + padding into the packed fc weight.
    fcw = params["fc_w"].reshape(120, 16, 25)           # (j, c, p)
    fcw = jnp.transpose(fcw, (2, 1, 0)).reshape(400, 120)   # row = p*16 + c
    wfc = jnp.pad(fcw, ((0, FC_K_PAD - 400),
                        (0, LANES - 120))).astype(jnp.bfloat16)       # (512, 128)
    bfc = jnp.pad(params["fc_b"], (0, LANES - 120))[None, :].astype(jnp.float32)

    wfc1 = jnp.pad(params["fc1_w"].T,
                   ((0, LANES - 120), (0, LANES - 84))).astype(jnp.bfloat16)
    bfc1 = jnp.pad(params["fc1_b"], (0, LANES - 84))[None, :].astype(jnp.float32)

    wfc2 = jnp.pad(params["fc2_w"].T,
                   ((0, LANES - 84), (0, LANES - num_classes))).astype(jnp.bfloat16)
    bfc2 = jnp.concatenate(
        [params["fc2_b"].astype(jnp.float32),
         jnp.full((LANES - num_classes,), NEG_INF, jnp.float32)])[None, :]

    return {
        "conv1_w": w1, "conv1_b": _pack_conv_bias(b1),
        "conv2_w": w2, "conv2_b": _pack_conv_bias(b2),
        "fc_w": wfc, "fc_b": bfc,
        "fc1_w": wfc1, "fc1_b": bfc1,
        "fc2_w": wfc2, "fc2_b": bfc2,
    }


# ----------------------------------------------------------------------------
# Forward pass (3 pallas_calls)
# ----------------------------------------------------------------------------
def lenet5_forward(packed, x, *, num_classes):
    N = x.shape[0]
    x_nhwc = jnp.transpose(x, (0, 2, 3, 1))                        # (N,32,32,1)

    cols1 = _im2col_pooled(x_nhwc, out_hw=14, k_pad=LANES, r_pad=200)
    p1 = conv_pool(cols1, packed["conv1_w"], packed["conv1_b"])
    p1 = p1[:, :196, :6].reshape(N, 14, 14, 6)                     # layer1 out

    cols2 = _im2col_pooled(p1, out_hw=5, k_pad=2 * LANES, r_pad=32)
    p2 = conv_pool(cols2, packed["conv2_w"], packed["conv2_b"])

    # Compact flatten to the 400 real classifier features (index = p*16 + c);
    # the PyTorch c*25+p ordering is folded into the packed fc weight.
    h = p2[:, :25, :16].reshape(N, 400)
    h = jnp.pad(h, ((0, 0), (0, FC_K_PAD - 400)))                  # (N, 512)

    probs = fc_head(h, packed["fc_w"], packed["fc_b"],
                    packed["fc1_w"], packed["fc1_b"],
                    packed["fc2_w"], packed["fc2_b"])
    return probs[:, :num_classes]


# ----------------------------------------------------------------------------
# Pure-JAX reference (f32, HIGHEST precision) for correctness checking
# ----------------------------------------------------------------------------
def lenet5_reference(params, x):
    hp = jax.lax.Precision.HIGHEST

    def conv(x, w, b):
        y = jax.lax.conv_general_dilated(
            x, w, (1, 1), "VALID",
            dimension_numbers=("NCHW", "OIHW", "NCHW"), precision=hp)
        return y + b[None, :, None, None]

    def bn(x, p):
        g, be, m, v = p
        g, be, m, v = (t[None, :, None, None] for t in (g, be, m, v))
        return (x - m) / jnp.sqrt(v + BN_EPS) * g + be

    def pool(x):
        N, C, H, W = x.shape
        return jnp.max(x.reshape(N, C, H // 2, 2, W // 2, 2), axis=(3, 5))

    h = pool(jax.nn.relu(bn(conv(x, params["conv1_w"], params["conv1_b"]),
                            params["bn1"])))
    h = pool(jax.nn.relu(bn(conv(h, params["conv2_w"], params["conv2_b"]),
                            params["bn2"])))
    h = h.reshape(h.shape[0], -1)
    h = jax.nn.relu(jnp.dot(h, params["fc_w"].T, precision=hp) + params["fc_b"])
    h = jax.nn.relu(jnp.dot(h, params["fc1_w"].T, precision=hp) + params["fc1_b"])
    h = jnp.dot(h, params["fc2_w"].T, precision=hp) + params["fc2_b"]
    return jax.nn.softmax(h, axis=1)


# ----------------------------------------------------------------------------
# Deterministic parameter init (shapes from LeNet5.__init__, num_classes=10)
# ----------------------------------------------------------------------------
def init_params(key, num_classes=10):
    ks = jax.random.split(key, 16)
    f32 = jnp.float32

    def rnd(k, shape, s=0.1):
        return (jax.random.normal(k, shape, f32) * s).astype(f32)

    def bn_params(kg, kb, c):
        gamma = 1.0 + rnd(kg, (c,), 0.05)
        beta = rnd(kb, (c,), 0.05)
        mean = jnp.zeros((c,), f32)        # eval-mode running stats
        var = jnp.ones((c,), f32)
        return (gamma, beta, mean, var)

    return {
        "conv1_w": rnd(ks[0], (6, 1, 5, 5)),
        "conv1_b": rnd(ks[1], (6,)),
        "bn1": bn_params(ks[2], ks[3], 6),
        "conv2_w": rnd(ks[4], (16, 6, 5, 5)),
        "conv2_b": rnd(ks[5], (16,)),
        "bn2": bn_params(ks[6], ks[7], 16),
        "fc_w": rnd(ks[8], (120, 400)),
        "fc_b": rnd(ks[9], (120,)),
        "fc1_w": rnd(ks[10], (84, 120)),
        "fc1_b": rnd(ks[11], (84,)),
        "fc2_w": rnd(ks[12], (num_classes, 84)),
        "fc2_b": rnd(ks[13], (num_classes,)),
    }


if __name__ == "__main__":
    key = jax.random.PRNGKey(0)
    pkey, xkey = jax.random.split(key)
    num_classes = 10
    params = init_params(pkey, num_classes)
    packed = pack_params(params, num_classes)

    # LeNet-5 geometry requires 32x32 spatial input so that fc sees 16*5*5=400.
    x = jax.random.normal(xkey, (2, 1, 32, 32), jnp.float32)

    fwd = jax.jit(functools.partial(lenet5_forward, num_classes=num_classes))
    out = jax.block_until_ready(fwd(packed, x))

    ref = jax.block_until_ready(lenet5_reference(params, x))
    # The kernel path uses bf16 MXU operands (f32 accumulation) and the
    # approximate EUP reciprocal, so allow ~1e-3-level differences vs. the
    # f32 HIGHEST-precision reference.
    np.testing.assert_allclose(np.asarray(out), np.asarray(ref),
                               rtol=5e-2, atol=5e-3)
    assert out.shape == (2, num_classes)
    np.testing.assert_allclose(np.asarray(out).sum(axis=1), np.ones(2),
                               rtol=0, atol=1e-2)

    print("KERNEL_OK")
</pallas_src>

<mosaic_0001>
module attributes {stable_mosaic.version = 11 : i64} {
  func.func @_conv_pool_kernel(%arg0: i32, %arg1: memref<1x200x128xbf16, #tpu.memory_space<vmem>>, %arg2: memref<128x512xbf16, #tpu.memory_space<vmem>>, %arg3: memref<1x512xf32, #tpu.memory_space<vmem>>, %arg4: memref<1x200x128xbf16, #tpu.memory_space<vmem>>) attributes {dimension_semantics = [#tpu.dimension_semantics<parallel>], iteration_bounds = array<i64: 2>, scalar_prefetch = 0 : i64, scratch_operands = 0 : i64, tpu.core_type = #tpu.core_type<tc>, window_params = [{transform_indices = @transform_0, window_bounds = array<i64: 1, 200, 128>}, {pipeline_mode = #tpu.pipeline_mode<synchronous>, transform_indices = @transform_1, window_bounds = array<i64: 128, 512>}, {pipeline_mode = #tpu.pipeline_mode<synchronous>, transform_indices = @transform_2, window_bounds = array<i64: 1, 512>}, {transform_indices = @transform_3, window_bounds = array<i64: 1, 200, 128>}]} {
    %c0 = arith.constant 0 : index
    %c0_0 = arith.constant 0 : index
    %c0_1 = arith.constant 0 : index
    %0 = vector.load %arg1[%c0, %c0_0, %c0_1] : memref<1x200x128xbf16, #tpu.memory_space<vmem>>, vector<1x200x128xbf16>
    %1 = vector.shape_cast %0 : vector<1x200x128xbf16> to vector<200x128xbf16>
    %c0_2 = arith.constant 0 : index
    %c0_3 = arith.constant 0 : index
    %2 = vector.load %arg2[%c0_2, %c0_3] : memref<128x512xbf16, #tpu.memory_space<vmem>>, vector<128x512xbf16>
    %cst = arith.constant dense<0.000000e+00> : vector<200x512xf32>
    %3 = tpu.matmul %1, %2, %cst {dimension_numbers = #tpu.dot_dimension_numbers<[1], [0], [0], [1], [0, 0, 1, 1], [], []>} : vector<200x128xbf16>, vector<128x512xbf16>, vector<200x512xf32> -> vector<200x512xf32>
    %c0_4 = arith.constant 0 : index
    %c0_5 = arith.constant 0 : index
    %4 = vector.load %arg3[%c0_4, %c0_5] : memref<1x512xf32, #tpu.memory_space<vmem>>, vector<1x512xf32>
    %5 = vector.broadcast %4 : vector<1x512xf32> to vector<200x512xf32>
    %6 = arith.addf %3, %5 : vector<200x512xf32>
    %cst_6 = arith.constant 0.000000e+00 : f32
    %7 = vector.broadcast %cst_6 : f32 to vector<200x512xf32>
    %8 = arith.maximumf %6, %7 : vector<200x512xf32>
    %9 = vector.extract_strided_slice %8 {offsets = [0, 0], sizes = [200, 128], strides = [1, 1]} : vector<200x512xf32> to vector<200x128xf32>
    %10 = vector.extract_strided_slice %8 {offsets = [0, 128], sizes = [200, 128], strides = [1, 1]} : vector<200x512xf32> to vector<200x128xf32>
    %11 = arith.maximumf %9, %10 : vector<200x128xf32>
    %12 = vector.extract_strided_slice %8 {offsets = [0, 256], sizes = [200, 128], strides = [1, 1]} : vector<200x512xf32> to vector<200x128xf32>
    %13 = vector.extract_strided_slice %8 {offsets = [0, 384], sizes = [200, 128], strides = [1, 1]} : vector<200x512xf32> to vector<200x128xf32>
    %14 = arith.maximumf %12, %13 : vector<200x128xf32>
    %15 = arith.maximumf %11, %14 : vector<200x128xf32>
    %16 = arith.truncf %15 : vector<200x128xf32> to vector<200x128xbf16>
    %c0_7 = arith.constant 0 : index
    %c0_8 = arith.constant 0 : index
    %c0_9 = arith.constant 0 : index
    %17 = vector.load %arg4[%c0_7, %c0_8, %c0_9] : memref<1x200x128xbf16, #tpu.memory_space<vmem>>, vector<1x200x128xbf16>
    %18 = vector.shape_cast %17 : vector<1x200x128xbf16> to vector<200x128xbf16>
    %19 = vector.shape_cast %16 : vector<200x128xbf16> to vector<1x200x128xbf16>
    tpu.vector_store %arg4[%c0_7, %c0_8, %c0_9], %19 {strides = array<i32>} : memref<1x200x128xbf16, #tpu.memory_space<vmem>>, vector<1x200x128xbf16>,
    return
  }
  func.func @transform_0(%arg0: i32) -> (i32, i32, i32) {
    %c0_i32 = arith.constant 0 : i32
    %c0_i32_0 = arith.constant 0 : i32
    %c0_i32_1 = arith.constant 0 : i32
    return %arg0, %c0_i32, %c0_i32_0 : i32, i32, i32
  }
  func.func @transform_1(%arg0: i32) -> (i32, i32) {
    %c0_i32 = arith.constant 0 : i32
    %c0_i32_0 = arith.constant 0 : i32
    %c0_i32_1 = arith.constant 0 : i32
    return %c0_i32, %c0_i32_0 : i32, i32
  }
  func.func @transform_2(%arg0: i32) -> (i32, i32) {
    %c0_i32 = arith.constant 0 : i32
    %c0_i32_0 = arith.constant 0 : i32
    %c0_i32_1 = arith.constant 0 : i32
    return %c0_i32, %c0_i32_0 : i32, i32
  }
  func.func @transform_3(%arg0: i32) -> (i32, i32, i32) {
    %c0_i32 = arith.constant 0 : i32
    %c0_i32_0 = arith.constant 0 : i32
    %c0_i32_1 = arith.constant 0 : i32
    return %arg0, %c0_i32, %c0_i32_0 : i32, i32, i32
  }
}

module attributes {stable_mosaic.version = 11 : i64} {
  func.func @_conv_pool_kernel(%arg0: i32, %arg1: memref<1x32x256xbf16, #tpu.memory_space<vmem>>, %arg2: memref<256x512xbf16, #tpu.memory_space<vmem>>, %arg3: memref<1x512xf32, #tpu.memory_space<vmem>>, %arg4: memref<1x32x128xbf16, #tpu.memory_space<vmem>>) attributes {dimension_semantics = [#tpu.dimension_semantics<parallel>], iteration_bounds = array<i64: 2>, scalar_prefetch = 0 : i64, scratch_operands = 0 : i64, tpu.core_type = #tpu.core_type<tc>, window_params = [{transform_indices = @transform_0, window_bounds = array<i64: 1, 32, 256>}, {pipeline_mode = #tpu.pipeline_mode<synchronous>, transform_indices = @transform_1, window_bounds = array<i64: 256, 512>}, {pipeline_mode = #tpu.pipeline_mode<synchronous>, transform_indices = @transform_2, window_bounds = array<i64: 1, 512>}, {transform_indices = @transform_3, window_bounds = array<i64: 1, 32, 128>}]} {
    %c0 = arith.constant 0 : index
    %c0_0 = arith.constant 0 : index
    %c0_1 = arith.constant 0 : index
    %0 = vector.load %arg1[%c0, %c0_0, %c0_1] : memref<1x32x256xbf16, #tpu.memory_space<vmem>>, vector<1x32x256xbf16>
    %1 = vector.shape_cast %0 : vector<1x32x256xbf16> to vector<32x256xbf16>
    %c0_2 = arith.constant 0 : index
    %c0_3 = arith.constant 0 : index
    %2 = vector.load %arg2[%c0_2, %c0_3] : memref<256x512xbf16, #tpu.memory_space<vmem>>, vector<256x512xbf16>
    %cst = arith.constant dense<0.000000e+00> : vector<32x512xf32>
    %3 = tpu.matmul %1, %2, %cst {dimension_numbers = #tpu.dot_dimension_numbers<[1], [0], [0], [1], [0, 0, 1, 1], [], []>} : vector<32x256xbf16>, vector<256x512xbf16>, vector<32x512xf32> -> vector<32x512xf32>
    %c0_4 = arith.constant 0 : index
    %c0_5 = arith.constant 0 : index
    %4 = vector.load %arg3[%c0_4, %c0_5] : memref<1x512xf32, #tpu.memory_space<vmem>>, vector<1x512xf32>
    %5 = vector.broadcast %4 : vector<1x512xf32> to vector<32x512xf32>
    %6 = arith.addf %3, %5 : vector<32x512xf32>
    %cst_6 = arith.constant 0.000000e+00 : f32
    %7 = vector.broadcast %cst_6 : f32 to vector<32x512xf32>
    %8 = arith.maximumf %6, %7 : vector<32x512xf32>
    %9 = vector.extract_strided_slice %8 {offsets = [0, 0], sizes = [32, 128], strides = [1, 1]} : vector<32x512xf32> to vector<32x128xf32>
    %10 = vector.extract_strided_slice %8 {offsets = [0, 128], sizes = [32, 128], strides = [1, 1]} : vector<32x512xf32> to vector<32x128xf32>
    %11 = arith.maximumf %9, %10 : vector<32x128xf32>
    %12 = vector.extract_strided_slice %8 {offsets = [0, 256], sizes = [32, 128], strides = [1, 1]} : vector<32x512xf32> to vector<32x128xf32>
    %13 = vector.extract_strided_slice %8 {offsets = [0, 384], sizes = [32, 128], strides = [1, 1]} : vector<32x512xf32> to vector<32x128xf32>
    %14 = arith.maximumf %12, %13 : vector<32x128xf32>
    %15 = arith.maximumf %11, %14 : vector<32x128xf32>
    %16 = arith.truncf %15 : vector<32x128xf32> to vector<32x128xbf16>
    %c0_7 = arith.constant 0 : index
    %c0_8 = arith.constant 0 : index
    %c0_9 = arith.constant 0 : index
    %17 = vector.load %arg4[%c0_7, %c0_8, %c0_9] : memref<1x32x128xbf16, #tpu.memory_space<vmem>>, vector<1x32x128xbf16>
    %18 = vector.shape_cast %17 : vector<1x32x128xbf16> to vector<32x128xbf16>
    %19 = vector.shape_cast %16 : vector<32x128xbf16> to vector<1x32x128xbf16>
    tpu.vector_store %arg4[%c0_7, %c0_8, %c0_9], %19 {strides = array<i32>} : memref<1x32x128xbf16, #tpu.memory_space<vmem>>, vector<1x32x128xbf16>,
    return
  }
  func.func @transform_0(%arg0: i32) -> (i32, i32, i32) {
    %c0_i32 = arith.constant 0 : i32
    %c0_i32_0 = arith.constant 0 : i32
    %c0_i32_1 = arith.constant 0 : i32
    return %arg0, %c0_i32, %c0_i32_0 : i32, i32, i32
  }
  func.func @transform_1(%arg0: i32) -> (i32, i32) {
    %c0_i32 = arith.constant 0 : i32
    %c0_i32_0 = arith.constant 0 : i32
    %c0_i32_1 = arith.constant 0 : i32
    return %c0_i32, %c0_i32_0 : i32, i32
  }
  func.func @transform_2(%arg0: i32) -> (i32, i32) {
    %c0_i32 = arith.constant 0 : i32
    %c0_i32_0 = arith.constant 0 : i32
    %c0_i32_1 = arith.constant 0 : i32
    return %c0_i32, %c0_i32_0 : i32, i32
  }
  func.func @transform_3(%arg0: i32) -> (i32, i32, i32) {
    %c0_i32 = arith.constant 0 : i32
    %c0_i32_0 = arith.constant 0 : i32
    %c0_i32_1 = arith.constant 0 : i32
    return %arg0, %c0_i32, %c0_i32_0 : i32, i32, i32
  }
}

module attributes {stable_mosaic.version = 11 : i64} {
  func.func @_fc_head_kernel(%arg0: memref<2x512xbf16, #tpu.memory_space<vmem>>, %arg1: memref<512x128xbf16, #tpu.memory_space<vmem>>, %arg2: memref<1x128xf32, #tpu.memory_space<vmem>>, %arg3: memref<128x128xbf16, #tpu.memory_space<vmem>>, %arg4: memref<1x128xf32, #tpu.memory_space<vmem>>, %arg5: memref<128x128xbf16, #tpu.memory_space<vmem>>, %arg6: memref<1x128xf32, #tpu.memory_space<vmem>>, %arg7: memref<2x128xf32, #tpu.memory_space<vmem>>) attributes {dimension_semantics = [], scalar_prefetch = 0 : i64, scratch_operands = 0 : i64, tpu.core_type = #tpu.core_type<tc>} {
    %c0 = arith.constant 0 : index
    %c0_0 = arith.constant 0 : index
    %0 = vector.load %arg0[%c0, %c0_0] : memref<2x512xbf16, #tpu.memory_space<vmem>>, vector<2x512xbf16>
    %c0_1 = arith.constant 0 : index
    %c0_2 = arith.constant 0 : index
    %1 = vector.load %arg1[%c0_1, %c0_2] : memref<512x128xbf16, #tpu.memory_space<vmem>>, vector<512x128xbf16>
    %cst = arith.constant dense<0.000000e+00> : vector<2x128xf32>
    %2 = tpu.matmul %0, %1, %cst {dimension_numbers = #tpu.dot_dimension_numbers<[1], [0], [0], [1], [0, 0, 1, 1], [], []>} : vector<2x512xbf16>, vector<512x128xbf16>, vector<2x128xf32> -> vector<2x128xf32>
    %c0_3 = arith.constant 0 : index
    %c0_4 = arith.constant 0 : index
    %3 = vector.load %arg2[%c0_3, %c0_4] : memref<1x128xf32, #tpu.memory_space<vmem>>, vector<1x128xf32>
    %4 = vector.broadcast %3 : vector<1x128xf32> to vector<2x128xf32>
    %5 = arith.addf %2, %4 : vector<2x128xf32>
    %cst_5 = arith.constant 0.000000e+00 : f32
    %6 = vector.broadcast %cst_5 : f32 to vector<2x128xf32>
    %7 = arith.maximumf %5, %6 : vector<2x128xf32>
    %8 = arith.truncf %7 : vector<2x128xf32> to vector<2x128xbf16>
    %c0_6 = arith.constant 0 : index
    %c0_7 = arith.constant 0 : index
    %9 = vector.load %arg3[%c0_6, %c0_7] : memref<128x128xbf16, #tpu.memory_space<vmem>>, vector<128x128xbf16>
    %cst_8 = arith.constant dense<0.000000e+00> : vector<2x128xf32>
    %10 = tpu.matmul %8, %9, %cst_8 {dimension_numbers = #tpu.dot_dimension_numbers<[1], [0], [0], [1], [0, 0, 1, 1], [], []>} : vector<2x128xbf16>, vector<128x128xbf16>, vector<2x128xf32> -> vector<2x128xf32>
    %c0_9 = arith.constant 0 : index
    %c0_10 = arith.constant 0 : index
    %11 = vector.load %arg4[%c0_9, %c0_10] : memref<1x128xf32, #tpu.memory_space<vmem>>, vector<1x128xf32>
    %12 = vector.broadcast %11 : vector<1x128xf32> to vector<2x128xf32>
    %13 = arith.addf %10, %12 : vector<2x128xf32>
    %cst_11 = arith.constant 0.000000e+00 : f32
    %14 = vector.broadcast %cst_11 : f32 to vector<2x128xf32>
    %15 = arith.maximumf %13, %14 : vector<2x128xf32>
    %16 = arith.truncf %15 : vector<2x128xf32> to vector<2x128xbf16>
    %c0_12 = arith.constant 0 : index
    %c0_13 = arith.constant 0 : index
    %17 = vector.load %arg5[%c0_12, %c0_13] : memref<128x128xbf16, #tpu.memory_space<vmem>>, vector<128x128xbf16>
    %cst_14 = arith.constant dense<0.000000e+00> : vector<2x128xf32>
    %18 = tpu.matmul %16, %17, %cst_14 {dimension_numbers = #tpu.dot_dimension_numbers<[1], [0], [0], [1], [0, 0, 1, 1], [], []>} : vector<2x128xbf16>, vector<128x128xbf16>, vector<2x128xf32> -> vector<2x128xf32>
    %c0_15 = arith.constant 0 : index
    %c0_16 = arith.constant 0 : index
    %19 = vector.load %arg6[%c0_15, %c0_16] : memref<1x128xf32, #tpu.memory_space<vmem>>, vector<1x128xf32>
    %20 = vector.broadcast %19 : vector<1x128xf32> to vector<2x128xf32>
    %21 = arith.addf %18, %20 : vector<2x128xf32>
    %cst_17 = arith.constant dense<0xFF800000> : vector<2xf32>
    %22 = vector.multi_reduction <maximumf>, %21, %cst_17 [1] : vector<2x128xf32> to vector<2xf32>
    %23 = vector.shape_cast %22 : vector<2xf32> to vector<2x1xf32>
    %24 = vector.broadcast %23 : vector<2x1xf32> to vector<2x128xf32>
    %25 = arith.subf %21, %24 : vector<2x128xf32>
    %26 = math.exp %25 : vector<2x128xf32>
    %cst_18 = arith.constant dense<0.000000e+00> : vector<2xf32>
    %27 = vector.multi_reduction <add>, %26, %cst_18 [1] : vector<2x128xf32> to vector<2xf32>
    %28 = vector.shape_cast %27 : vector<2xf32> to vector<2x1xf32>
    %29 = tpu.reciprocal %28 {approx = true} : vector<2x1xf32> -> vector<2x1xf32>
    %30 = vector.broadcast %29 : vector<2x1xf32> to vector<2x128xf32>
    %31 = arith.mulf %26, %30 : vector<2x128xf32>
    %c0_19 = arith.constant 0 : index
    %c0_20 = arith.constant 0 : index
    %32 = vector.load %arg7[%c0_19, %c0_20] : memref<2x128xf32, #tpu.memory_space<vmem>>, vector<2x128xf32>
    tpu.vector_store %arg7[%c0_19, %c0_20], %31 {strides = array<i32>} : memref<2x128xf32, #tpu.memory_space<vmem>>, vector<2x128xf32>,
    return
  }
}

</mosaic_0001>

<llo_original>
// kernel: lenet5_forward.3
$region0: #{lenet5_forward.3}
  #allocation0 [shape = 'u32[]', space=smem, size = 0x4, offset = 0x4, fixed_abs, tag = 'smem constant byte address 0x4 - core index']
  #allocation1 [shape = 'u32[72,128]{1,0:T(1,128)}', space=vmem, size = 0x9000, scoped, tag = 'internal scratch']
  %s0 = inlined_call_operand.vmem [shape: bf16[2,200,128], index: 0, kind: input, shape index: {}]
  %s1 = inlined_call_operand.vmem [shape: bf16[128,512], index: 1, kind: input, shape index: {}]
  %s2 = inlined_call_operand.vmem [shape: f32[1,512], index: 2, kind: input, shape index: {}]
  %s3 = inlined_call_operand.vmem [shape: bf16[2,200,128], index: 3, kind: output, shape index: {}]
  %s4 = sld [smem:[#allocation0]]
  $region45: #{lenet5_forward.3} parent=0
    _
  %s6 = ssub.s32 1, %s4
  %s7 = scalar_select 0, %s6, %s4
  loop: start=0, step=1, limit=4
  $region2: #{lenet5_forward.3} parent=0 // loop_pre_header
    _
  $region3: #{lenet5_forward.3} parent=0 // loop_header
    %s9 = sphi 0, %s13
    %p10 = scmp.ge.s32.totalorder %s9, 4
    %s19 = sphi 0, %s21
    %s22 = sphi 0, %s19
    %s23 = sphi 0, %s22
    %s39 = sphi 0, %s23
    %s43 = sphi 0, %s43
    %s45 = sphi 0, %s43
    %s46 = sphi 0, %s45
    %s60 = sphi 0, %s46
    %s64 = sphi 0, %s64
    %s66 = sphi 0, %s64
    %s67 = sphi 0, %s66
    %s81 = sphi 0, %s67
    %s87 = sphi 0, %s89
    %s90 = sphi 0, %s87
    %s91 = sphi 0, %s90
    %s107 = sphi 0, %s91
  $region4: #{lenet5_forward.3} parent=0 // loop_header_branch
    %12 = sbr.rel (%p10) target = $region8
  $region5: #{lenet5_forward.3} parent=0 // loop_body
    %s14 = ssub.s32 %s9, 1
    %s15 = ssub.s32 %s9, 2
    %s16 = sadd.s32 %s9, 1
    %s17 = ssub.s32 %s9, %s16
    %p18 = scmp.eq.s32.totalorder %s17, 0
    %s20 = sadd.s32 %s19, 1
    %s21 = scalar_select %p18, %s19, %s20
    %p24 = pneg %p18
    %p25 = scmp.eq.s32.totalorder %s9, 1
    %p26 = por %p24, %p25
    %p27 = scmp.ne.s32.totalorder %s19, %s22
    %p28 = scmp.eq.s32.totalorder %s9, 0
    %p29 = por %p27, %p28
    %p30 = scmp.ne.s32.totalorder %s19, %s22
    %p31 = scmp.eq.s32.totalorder %s14, 1
    %p32 = por %p30, %p31
    %p33 = scmp.ne.s32.totalorder %s22, %s23
    %p34 = scmp.eq.s32.totalorder %s14, 0
    %p35 = por %p33, %p34
    %p36 = scmp.ne.s32.totalorder %s22, %s23
    %p37 = scmp.eq.s32.totalorder %s15, 1
    %p38 = por %p36, %p37
    %p40 = scmp.ne.s32.totalorder %s23, %s39
    %p41 = scmp.eq.s32.totalorder %s15, 0
    %p42 = por %p40, %p41
    %s44 = sadd.s32 %s43, 1
    %p47 = scmp.eq.s32.totalorder %s9, 1
    %p48 = scmp.ne.s32.totalorder %s43, %s45
    %p49 = scmp.eq.s32.totalorder %s9, 0
    %p50 = por %p48, %p49
    %p51 = scmp.ne.s32.totalorder %s43, %s45
    %p52 = scmp.eq.s32.totalorder %s14, 1
    %p53 = por %p51, %p52
    %p54 = scmp.ne.s32.totalorder %s45, %s46
    %p55 = scmp.eq.s32.totalorder %s14, 0
    %p56 = por %p54, %p55
    %p57 = scmp.ne.s32.totalorder %s45, %s46
    %p58 = scmp.eq.s32.totalorder %s15, 1
    %p59 = por %p57, %p58
    %p61 = scmp.ne.s32.totalorder %s46, %s60
    %p62 = scmp.eq.s32.totalorder %s15, 0
    %p63 = por %p61, %p62
    %s65 = sadd.s32 %s64, 1
    %p68 = scmp.eq.s32.totalorder %s9, 1
    %p69 = scmp.ne.s32.totalorder %s64, %s66
    %p70 = scmp.eq.s32.totalorder %s9, 0
    %p71 = por %p69, %p70
    %p72 = scmp.ne.s32.totalorder %s64, %s66
    %p73 = scmp.eq.s32.totalorder %s14, 1
    %p74 = por %p72, %p73
    %p75 = scmp.ne.s32.totalorder %s66, %s67
    %p76 = scmp.eq.s32.totalorder %s14, 0
    %p77 = por %p75, %p76
    %p78 = scmp.ne.s32.totalorder %s66, %s67
    %p79 = scmp.eq.s32.totalorder %s15, 1
    %p80 = por %p78, %p79
    %p82 = scmp.ne.s32.totalorder %s67, %s81
    %p83 = scmp.eq.s32.totalorder %s15, 0
    %p84 = por %p82, %p83
    %s85 = ssub.s32 %s9, %s16
    %p86 = scmp.eq.s32.totalorder %s85, 0
    %s88 = sadd.s32 %s87, 1
    %s89 = scalar_select %p86, %s87, %s88
    %p92 = pneg %p86
    %p93 = scmp.eq.s32.totalorder %s9, 1
    %p94 = por %p92, %p93
    %p95 = scmp.ne.s32.totalorder %s87, %s90
    %p96 = scmp.eq.s32.totalorder %s9, 0
    %p97 = por %p95, %p96
    %p98 = scmp.ne.s32.totalorder %s87, %s90
    %p99 = scmp.eq.s32.totalorder %s14, 1
    %p100 = por %p98, %p99
    %p101 = scmp.ne.s32.totalorder %s90, %s91
    %p102 = scmp.eq.s32.totalorder %s14, 0
    %p103 = por %p101, %p102
    %p104 = scmp.ne.s32.totalorder %s90, %s91
    %p105 = scmp.eq.s32.totalorder %s15, 1
    %p106 = por %p104, %p105
    %p108 = scmp.ne.s32.totalorder %s91, %s107
    %p109 = scmp.eq.s32.totalorder %s15, 0
    %p110 = por %p108, %p109
    %p111 = scmp.le.s32.totalorder 1, %s9
    %p112 = scmp.lt.s32.totalorder %s9, 3
    %p113 = pnand %p111, %p112
    %p114 = pneg %p113
    // Predicated region
    $region9: #{lenet5_forward.3} parent=5 // pred_check
      _
    $region10: #{lenet5_forward.3} parent=5 // pred_check_branch
      %116 = sbr.rel (%p113) target = $region12
    $region11: #{lenet5_forward.3} parent=5 // pred_region
      %s117 = ssub.s32 %s9, 1
      // Predicated region
      $region13: #{lenet5_forward.3} parent=11 // pred_check
        %p118 = pneg %p56
      $region14: #{lenet5_forward.3} parent=11 // pred_check_branch
        %120 = sbr.rel (%p118) target = $region16
      $region15: #{lenet5_forward.3} parent=11 // pred_region
        _
      $region16: #{lenet5_forward.3} parent=11 // pred_fallthru
        _
      // Predicated region
      $region17: #{lenet5_forward.3} parent=11 // pred_check
        %p121 = pneg %p77
      $region18: #{lenet5_forward.3} parent=11 // pred_check_branch
        %123 = sbr.rel (%p121) target = $region20
      $region19: #{lenet5_forward.3} parent=11 // pred_region
        _
      $region20: #{lenet5_forward.3} parent=11 // pred_fallthru
        _
    $region12: #{lenet5_forward.3} parent=5 // pred_fallthru
      _
    %p124 = scmp.lt.s32.totalorder %s9, 2
    // Predicated region
    $region21: #{lenet5_forward.3} parent=5 // pred_check
      %p125 = pneg %p124
    $region22: #{lenet5_forward.3} parent=5 // pred_check_branch
      %127 = sbr.rel (%p125) target = $region24
    $region23: #{lenet5_forward.3} parent=5 // pred_region
      // Predicated region
      $region25: #{lenet5_forward.3} parent=23 // pred_check
        %p128 = pneg %p29
      $region26: #{lenet5_forward.3} parent=23 // pred_check_branch
        %130 = sbr.rel (%p128) target = $region28
      $region27: #{lenet5_forward.3} parent=23 // pred_region
        %p131 = scmp.lt.s32.totalorder %s9, 1
        %s132 = scalar_select %p131, %s9, 1
        %s133 = smul.addr %s132, 25
        %s134 = smul.addr %s133, 4
        %s135 = scalar_lea.vmem %s0, %s134
      $region28: #{lenet5_forward.3} parent=23 // pred_fallthru
        _
    $region24: #{lenet5_forward.3} parent=5 // pred_fallthru
      _
    %p136 = scmp.le.s32.totalorder 1, %s9
    %p137 = scmp.lt.s32.totalorder %s9, 3
    %p138 = pnand %p136, %p137
    %p139 = pneg %p138
    // Predicated region
    $region29: #{lenet5_forward.3} parent=5 // pred_check
      _
    $region30: #{lenet5_forward.3} parent=5 // pred_check_branch
      %141 = sbr.rel (%p138) target = $region32
    $region31: #{lenet5_forward.3} parent=5 // pred_region
      %s142 = ssub.s32 %s9, 1
      %p143 = scmp.lt.s32.totalorder %s14, 1
      %s144 = scalar_select %p143, %s14, 1
      %s145 = smul.addr %s144, 25
      %s146 = smul.addr %s145, 4
      %s147 = scalar_lea.vmem %s0, %s146
      %p148 = pneg %p35
      %p149 = pneg %p32
      %p150 = pneg %p56
      %p151 = pneg %p53
      %p152 = pneg %p77
      %p153 = pneg %p74
      %p154 = pneg %p103
      %p155 = pneg %p100
      %p156 = scmp.lt.s32.totalorder %s14, 1
      %s157 = scalar_select %p156, %s14, 1
      %s158 = smul.addr %s157, 25
      %s159 = smul.addr %s158, 4
      %s160 = scalar_lea.vmem %s3, %s159
      %p161 = scmp.lt.s32.totalorder %s14, 1
      %s162 = scalar_select %p161, %s14, 1
      %s163 = smul.addr %s162, 25
      %s164 = smul.addr %s163, 4
      %s165 = scalar_lea.vmem %s0, %s164
      %p166 = scmp.lt.s32.totalorder %s14, 1
      %s167 = scalar_select %p166, %s14, 1
      %s168 = smul.addr %s167, 25
      %s169 = smul.addr %s168, 4
      %s170 = scalar_lea.vmem %s3, %s169
      %v171 = vld [vmem:[%s165] sm:$0xf]
      %v172 = vld [vmem:[%s165 + $0x4] sm:$0xf]
      %v173 = vld [vmem:[%s165 + $0x8] sm:$0xf]
      %v174 = vld [vmem:[%s165 + $0xc] sm:$0xf]
      %v175 = vld [vmem:[%s165 + $0x10] sm:$0xf]
      %v176 = vld [vmem:[%s165 + $0x14] sm:$0xf]
      %v177 = vld [vmem:[%s165 + $0x18] sm:$0xf]
      %v178 = vld [vmem:[%s165 + $0x1c] sm:$0xf]
      %v179 = vld [vmem:[%s165 + $0x20] sm:$0xf]
      %v180 = vld [vmem:[%s165 + $0x24] sm:$0xf]
      %v181 = vld [vmem:[%s165 + $0x28] sm:$0xf]
      %v182 = vld [vmem:[%s165 + $0x2c] sm:$0xf]
      %v183 = vld [vmem:[%s165 + $0x30] sm:$0xf]
      %v184 = vld [vmem:[%s165 + $0x34] sm:$0xf]
      %v185 = vld [vmem:[%s165 + $0x38] sm:$0xf]
      %v186 = vld [vmem:[%s165 + $0x3c] sm:$0xf]
      %v187 = vld [vmem:[%s165 + $0x40] sm:$0xf]
      %v188 = vld [vmem:[%s165 + $0x44] sm:$0xf]
      %v189 = vld [vmem:[%s165 + $0x48] sm:$0xf]
      %v190 = vld [vmem:[%s165 + $0x4c] sm:$0xf]
      %v191 = vld [vmem:[%s165 + $0x50] sm:$0xf]
      %v192 = vld [vmem:[%s165 + $0x54] sm:$0xf]
      %v193 = vld [vmem:[%s165 + $0x58] sm:$0xf]
      %v194 = vld [vmem:[%s165 + $0x5c] sm:$0xf]
      %v195 = vld [vmem:[%s165 + $0x60] sm:$0xf]
      %v196 = vld [vmem:[%s1] sm:$0xff]
      %v197 = vld [vmem:[%s1 + $0x8] sm:$0xff]
      %v198 = vld [vmem:[%s1 + $0x10] sm:$0xff]
      %v199 = vld [vmem:[%s1 + $0x18] sm:$0xff]
      %v200 = vld [vmem:[%s1 + $0x20] sm:$0xff]
      %v201 = vld [vmem:[%s1 + $0x28] sm:$0xff]
      %v202 = vld [vmem:[%s1 + $0x30] sm:$0xff]
      %v203 = vld [vmem:[%s1 + $0x38] sm:$0xff]
      %v204 = vld [vmem:[%s1 + $0x40] sm:$0xff]
      %v205 = vld [vmem:[%s1 + $0x48] sm:$0xff]
      %v206 = vld [vmem:[%s1 + $0x50] sm:$0xff]
      %v207 = vld [vmem:[%s1 + $0x58] sm:$0xff]
      %v208 = vld [vmem:[%s1 + $0x60] sm:$0xff]
      %v209 = vld [vmem:[%s1 + $0x68] sm:$0xff]
      %v210 = vld [vmem:[%s1 + $0x70] sm:$0xff]
      %v211 = vld [vmem:[%s1 + $0x78] sm:$0xff]
      %v212 = vld [vmem:[%s1 + $0x80] sm:$0xff]
      %v213 = vld [vmem:[%s1 + $0x88] sm:$0xff]
      %v214 = vld [vmem:[%s1 + $0x90] sm:$0xff]
      %v215 = vld [vmem:[%s1 + $0x98] sm:$0xff]
      %v216 = vld [vmem:[%s1 + $0xa0] sm:$0xff]
      %v217 = vld [vmem:[%s1 + $0xa8] sm:$0xff]
      %v218 = vld [vmem:[%s1 + $0xb0] sm:$0xff]
      %v219 = vld [vmem:[%s1 + $0xb8] sm:$0xff]
      %v220 = vld [vmem:[%s1 + $0xc0] sm:$0xff]
      %v221 = vld [vmem:[%s1 + $0xc8] sm:$0xff]
      %v222 = vld [vmem:[%s1 + $0xd0] sm:$0xff]
      %v223 = vld [vmem:[%s1 + $0xd8] sm:$0xff]
      %v224 = vld [vmem:[%s1 + $0xe0] sm:$0xff]
      %v225 = vld [vmem:[%s1 + $0xe8] sm:$0xff]
      %v226 = vld [vmem:[%s1 + $0xf0] sm:$0xff]
      %v227 = vld [vmem:[%s1 + $0xf8] sm:$0xff]
      %v228 = vld [vmem:[%s2] sm:$0xf]
      %v230 = vperm.slane %v228, 0
      %v231 = vperm.slane %v228, 1
      %v232 = vperm.slane %v228, 2
      %v233 = vperm.slane %v228, 3
      %v263 = vunpack.c.l.b16 %v171
      %v264 = vunpack.c.l.b16 %v172
      %v265 = vunpack.c.l.b16 %v173
      %v266 = vunpack.c.l.b16 %v174
      %v267 = vunpack.c.l.b16 %v175
      %v268 = vunpack.c.l.b16 %v176
      %v269 = vunpack.c.l.b16 %v177
      %v270 = vunpack.c.l.b16 %v178
      %v271 = vunpack.c.l.b16 %v179
      %v272 = vunpack.c.l.b16 %v180
      %v273 = vunpack.c.l.b16 %v181
      %v274 = vunpack.c.l.b16 %v182
      %v275 = vunpack.c.l.b16 %v183
      %v276 = vunpack.c.l.b16 %v184
      %v277 = vunpack.c.l.b16 %v185
      %v278 = vunpack.c.l.b16 %v186
      %v279 = vunpack.c.l.b16 %v187
      %v280 = vunpack.c.l.b16 %v188
      %v281 = vunpack.c.l.b16 %v189
      %v282 = vunpack.c.l.b16 %v190
      %v283 = vunpack.c.l.b16 %v191
      %v284 = vunpack.c.l.b16 %v192
      %v285 = vunpack.c.l.b16 %v193
      %v286 = vunpack.c.l.b16 %v194
      %v287 = vunpack.c.l.b16 %v195
      %v288 = vpack.c.b16 %v264, %v263
      %v289 = vpack.c.b16 %v266, %v265
      %v290 = vpack.c.b16 %v268, %v267
      %v291 = vpack.c.b16 %v270, %v269
      %v292 = vpack.c.b16 %v272, %v271
      %v293 = vpack.c.b16 %v274, %v273
      %v294 = vpack.c.b16 %v276, %v275
      %v295 = vpack.c.b16 %v278, %v277
      %v296 = vpack.c.b16 %v280, %v279
      %v297 = vpack.c.b16 %v282, %v281
      %v298 = vpack.c.b16 %v284, %v283
      %v299 = vpack.c.b16 %v286, %v285
      %v300 = vpack.c.b16 %v287, %v287
      %v346 = vunpack.c.l.b16 %v196
      %v347 = vunpack.c.h.b16 %v196
      %v348 = vunpack.c.l.b16 %v197
      %v349 = vunpack.c.h.b16 %v197
      %v350 = vunpack.c.l.b16 %v198
      %v351 = vunpack.c.h.b16 %v198
      %v352 = vunpack.c.l.b16 %v199
      %v353 = vunpack.c.h.b16 %v199
      %v354 = vunpack.c.l.b16 %v200
      %v355 = vunpack.c.h.b16 %v200
      %v356 = vunpack.c.l.b16 %v201
      %v357 = vunpack.c.h.b16 %v201
      %v358 = vunpack.c.l.b16 %v202
      %v359 = vunpack.c.h.b16 %v202
      %v360 = vunpack.c.l.b16 %v203
      %v361 = vunpack.c.h.b16 %v203
      %v362 = vunpack.c.l.b16 %v204
      %v363 = vunpack.c.h.b16 %v204
      %v364 = vunpack.c.l.b16 %v205
      %v365 = vunpack.c.h.b16 %v205
      %v366 = vunpack.c.l.b16 %v206
      %v367 = vunpack.c.h.b16 %v206
      %v368 = vunpack.c.l.b16 %v207
      %v369 = vunpack.c.h.b16 %v207
      %v370 = vunpack.c.l.b16 %v208
      %v371 = vunpack.c.h.b16 %v208
      %v372 = vunpack.c.l.b16 %v209
      %v373 = vunpack.c.h.b16 %v209
      %v374 = vunpack.c.l.b16 %v210
      %v375 = vunpack.c.h.b16 %v210
      %v376 = vunpack.c.l.b16 %v211
      %v377 = vunpack.c.h.b16 %v211
      %v378 = vunpack.c.l.b16 %v212
      %v379 = vunpack.c.h.b16 %v212
      %v380 = vunpack.c.l.b16 %v213
      %v381 = vunpack.c.h.b16 %v213
      %v382 = vunpack.c.l.b16 %v214
      %v383 = vunpack.c.h.b16 %v214
      %v384 = vunpack.c.l.b16 %v215
      %v385 = vunpack.c.h.b16 %v215
      %v386 = vunpack.c.l.b16 %v216
      %v387 = vunpack.c.h.b16 %v216
      %v388 = vunpack.c.l.b16 %v217
      %v389 = vunpack.c.h.b16 %v217
      %v390 = vunpack.c.l.b16 %v218
      %v391 = vunpack.c.h.b16 %v218
      %v392 = vunpack.c.l.b16 %v219
      %v393 = vunpack.c.h.b16 %v219
      %v394 = vunpack.c.l.b16 %v220
      %v395 = vunpack.c.h.b16 %v220
      %v396 = vunpack.c.l.b16 %v221
      %v397 = vunpack.c.h.b16 %v221
      %v398 = vunpack.c.l.b16 %v222
      %v399 = vunpack.c.h.b16 %v222
      %v400 = vunpack.c.l.b16 %v223
      %v401 = vunpack.c.h.b16 %v223
      %v402 = vunpack.c.l.b16 %v224
      %v403 = vunpack.c.h.b16 %v224
      %v404 = vunpack.c.l.b16 %v225
      %v405 = vunpack.c.h.b16 %v225
      %v406 = vunpack.c.l.b16 %v226
      %v407 = vunpack.c.h.b16 %v226
      %v408 = vunpack.c.l.b16 %v227
      %v409 = vunpack.c.h.b16 %v227
      %v410 = vpack.c.b16 %v350, %v346
      %v411 = vpack.c.b16 %v351, %v347
      %v412 = vpack.c.b16 %v352, %v348
      %v413 = vpack.c.b16 %v353, %v349
      %v414 = vpack.c.b16 %v358, %v354
      %v415 = vpack.c.b16 %v359, %v355
      %v416 = vpack.c.b16 %v360, %v356
      %v417 = vpack.c.b16 %v361, %v357
      %v418 = vpack.c.b16 %v366, %v362
      %v419 = vpack.c.b16 %v367, %v363
      %v420 = vpack.c.b16 %v368, %v364
      %v421 = vpack.c.b16 %v369, %v365
      %v422 = vpack.c.b16 %v374, %v370
      %v423 = vpack.c.b16 %v375, %v371
      %v424 = vpack.c.b16 %v376, %v372
      %v425 = vpack.c.b16 %v377, %v373
      %v426 = vpack.c.b16 %v382, %v378
      %v427 = vpack.c.b16 %v383, %v379
      %v428 = vpack.c.b16 %v384, %v380
      %v429 = vpack.c.b16 %v385, %v381
      %v430 = vpack.c.b16 %v390, %v386
      %v431 = vpack.c.b16 %v391, %v387
      %v432 = vpack.c.b16 %v392, %v388
      %v433 = vpack.c.b16 %v393, %v389
      %v434 = vpack.c.b16 %v398, %v394
      %v435 = vpack.c.b16 %v399, %v395
      %v436 = vpack.c.b16 %v400, %v396
      %v437 = vpack.c.b16 %v401, %v397
      %v438 = vpack.c.b16 %v406, %v402
      %v439 = vpack.c.b16 %v407, %v403
      %v440 = vpack.c.b16 %v408, %v404
      %v441 = vpack.c.b16 %v409, %v405
      %474 = vmatpush.bf16.msra.mxu0 %v438
      %475 = vmatpush.bf16.msra.mxu0 %v434
      %476 = vmatpush.bf16.msra.mxu0 %v430
      %477 = vmatpush.bf16.msra.mxu0 %v426
      %478 = vmatpush.bf16.msra.mxu0 %v422
      %479 = vmatpush.bf16.msra.mxu0 %v418
      %480 = vmatpush.bf16.msra.mxu0 %v414
      %481 = vmatpush.bf16.msra.mxu0 %v410
      %482 = vmatmul.bf16.gmra.mxu0 %v288
      %v483 = vpop.f32.mrf.mxu0
      %v484 = vadd.f32 %v230, %v483
      %v485 = vpop.f32.mrf.mxu0
      %v486 = vadd.f32 %v230, %v485
      %487 = vmatmul.bf16.gmra.mxu0 %v289
      %v488 = vpop.f32.mrf.mxu0
      %v489 = vadd.f32 %v230, %v488
      %v490 = vpop.f32.mrf.mxu0
      %v491 = vadd.f32 %v230, %v490
      %492 = vmatmul.bf16.gmra.mxu0 %v290
      %v493 = vpop.f32.mrf.mxu0
      %v494 = vadd.f32 %v230, %v493
      %v495 = vpop.f32.mrf.mxu0
      %v496 = vadd.f32 %v230, %v495
      %497 = vmatmul.bf16.gmra.mxu0 %v291
      %v498 = vpop.f32.mrf.mxu0
      %v499 = vadd.f32 %v230, %v498
      %v500 = vpop.f32.mrf.mxu0
      %v501 = vadd.f32 %v230, %v500
      %502 = vmatmul.bf16.gmra.mxu0 %v292
      %v503 = vpop.f32.mrf.mxu0
      %v504 = vadd.f32 %v230, %v503
      %v505 = vpop.f32.mrf.mxu0
      %v506 = vadd.f32 %v230, %v505
      %507 = vmatmul.bf16.gmra.mxu0 %v293
      %v508 = vpop.f32.mrf.mxu0
      %v509 = vadd.f32 %v230, %v508
      %v510 = vpop.f32.mrf.mxu0
      %v511 = vadd.f32 %v230, %v510
      %512 = vmatmul.bf16.gmra.mxu0 %v294
      %v513 = vpop.f32.mrf.mxu0
      %v514 = vadd.f32 %v230, %v513
      %v515 = vpop.f32.mrf.mxu0
      %v516 = vadd.f32 %v230, %v515
      %517 = vmatmul.bf16.gmra.mxu0 %v295
      %v518 = vpop.f32.mrf.mxu0
      %v519 = vadd.f32 %v230, %v518
      %v520 = vpop.f32.mrf.mxu0
      %v521 = vadd.f32 %v230, %v520
      %522 = vmatmul.bf16.gmra.mxu0 %v296
      %v523 = vpop.f32.mrf.mxu0
      %v524 = vadd.f32 %v230, %v523
      %v525 = vpop.f32.mrf.mxu0
      %v526 = vadd.f32 %v230, %v525
      %527 = vmatmul.bf16.gmra.mxu0 %v297
      %v528 = vpop.f32.mrf.mxu0
      %v529 = vadd.f32 %v230, %v528
      %v530 = vpop.f32.mrf.mxu0
      %v531 = vadd.f32 %v230, %v530
      %532 = vmatmul.bf16.gmra.mxu0 %v298
      %v533 = vpop.f32.mrf.mxu0
      %v534 = vadd.f32 %v230, %v533
      %v535 = vpop.f32.mrf.mxu0
      %v536 = vadd.f32 %v230, %v535
      %537 = vmatmul.bf16.gmra.mxu0 %v299
      %v538 = vpop.f32.mrf.mxu0
      %v539 = vadd.f32 %v230, %v538
      %v540 = vpop.f32.mrf.mxu0
      %v541 = vadd.f32 %v230, %v540
      %542 = vmatmul.bf16.gmra.mxu0 %v300
      %v543 = vpop.f32.mrf.mxu0
      %v544 = vadd.f32 %v230, %v543
      %v545 = vpop.f32.mrf.mxu0
      %546 = vdwg.mxu0
      %547 = vmatpush.bf16.msra.mxu0 %v439
      %548 = vmatpush.bf16.msra.mxu0 %v435
      %549 = vmatpush.bf16.msra.mxu0 %v431
      %550 = vmatpush.bf16.msra.mxu0 %v427
      %551 = vmatpush.bf16.msra.mxu0 %v423
      %552 = vmatpush.bf16.msra.mxu0 %v419
      %553 = vmatpush.bf16.msra.mxu0 %v415
      %554 = vmatpush.bf16.msra.mxu0 %v411
      %555 = vmatmul.bf16.gmra.mxu0 %v288
      %v556 = vpop.f32.mrf.mxu0
      %v557 = vadd.f32 %v231, %v556
      %v558 = vpop.f32.mrf.mxu0
      %v559 = vadd.f32 %v231, %v558
      %560 = vmatmul.bf16.gmra.mxu0 %v289
      %v561 = vpop.f32.mrf.mxu0
      %v562 = vadd.f32 %v231, %v561
      %v563 = vpop.f32.mrf.mxu0
      %v564 = vadd.f32 %v231, %v563
      %565 = vmatmul.bf16.gmra.mxu0 %v290
      %v566 = vpop.f32.mrf.mxu0
      %v567 = vadd.f32 %v231, %v566
      %v568 = vpop.f32.mrf.mxu0
      %v569 = vadd.f32 %v231, %v568
      %570 = vmatmul.bf16.gmra.mxu0 %v291
      %v571 = vpop.f32.mrf.mxu0
      %v572 = vadd.f32 %v231, %v571
      %v573 = vpop.f32.mrf.mxu0
      %v574 = vadd.f32 %v231, %v573
      %575 = vmatmul.bf16.gmra.mxu0 %v292
      %v576 = vpop.f32.mrf.mxu0
      %v577 = vadd.f32 %v231, %v576
      %v578 = vpop.f32.mrf.mxu0
      %v579 = vadd.f32 %v231, %v578
      %580 = vmatmul.bf16.gmra.mxu0 %v293
      %v581 = vpop.f32.mrf.mxu0
      %v582 = vadd.f32 %v231, %v581
      %v583 = vpop.f32.mrf.mxu0
      %v584 = vadd.f32 %v231, %v583
      %585 = vmatmul.bf16.gmra.mxu0 %v294
      %v586 = vpop.f32.mrf.mxu0
      %v587 = vadd.f32 %v231, %v586
      %v588 = vpop.f32.mrf.mxu0
      %v589 = vadd.f32 %v231, %v588
      %590 = vmatmul.bf16.gmra.mxu0 %v295
      %v591 = vpop.f32.mrf.mxu0
      %v592 = vadd.f32 %v231, %v591
      %v593 = vpop.f32.mrf.mxu0
      %v594 = vadd.f32 %v231, %v593
      %595 = vmatmul.bf16.gmra.mxu0 %v296
      %v596 = vpop.f32.mrf.mxu0
      %v597 = vadd.f32 %v231, %v596
      %v598 = vpop.f32.mrf.mxu0
      %v599 = vadd.f32 %v231, %v598
      %600 = vmatmul.bf16.gmra.mxu0 %v297
      %v601 = vpop.f32.mrf.mxu0
      %v602 = vadd.f32 %v231, %v601
      %v603 = vpop.f32.mrf.mxu0
      %v604 = vadd.f32 %v231, %v603
      %605 = vmatmul.bf16.gmra.mxu0 %v298
      %v606 = vpop.f32.mrf.mxu0
      %v607 = vadd.f32 %v231, %v606
      %v608 = vpop.f32.mrf.mxu0
      %v609 = vadd.f32 %v231, %v608
      %610 = vmatmul.bf16.gmra.mxu0 %v299
      %v611 = vpop.f32.mrf.mxu0
      %v612 = vadd.f32 %v231, %v611
      %v613 = vpop.f32.mrf.mxu0
      %v614 = vadd.f32 %v231, %v613
      %615 = vmatmul.bf16.gmra.mxu0 %v300
      %v616 = vpop.f32.mrf.mxu0
      %v617 = vadd.f32 %v231, %v616
      %v618 = vpop.f32.mrf.mxu0
      %619 = vdwg.mxu0
      %620 = vmatpush.bf16.msra.mxu0 %v440
      %621 = vmatpush.bf16.msra.mxu0 %v436
      %622 = vmatpush.bf16.msra.mxu0 %v432
      %623 = vmatpush.bf16.msra.mxu0 %v428
      %624 = vmatpush.bf16.msra.mxu0 %v424
      %625 = vmatpush.bf16.msra.mxu0 %v420
      %626 = vmatpush.bf16.msra.mxu0 %v416
      %627 = vmatpush.bf16.msra.mxu0 %v412
      %628 = vmatmul.bf16.gmra.mxu0 %v288
      %v629 = vpop.f32.mrf.mxu0
      %v630 = vadd.f32 %v232, %v629
      %v631 = vpop.f32.mrf.mxu0
      %v632 = vadd.f32 %v232, %v631
      %633 = vmatmul.bf16.gmra.mxu0 %v289
      %v634 = vpop.f32.mrf.mxu0
      %v635 = vadd.f32 %v232, %v634
      %v636 = vpop.f32.mrf.mxu0
      %v637 = vadd.f32 %v232, %v636
      %638 = vmatmul.bf16.gmra.mxu0 %v290
      %v639 = vpop.f32.mrf.mxu0
      %v640 = vadd.f32 %v232, %v639
      %v641 = vpop.f32.mrf.mxu0
      %v642 = vadd.f32 %v232, %v641
      %643 = vmatmul.bf16.gmra.mxu0 %v291
      %v644 = vpop.f32.mrf.mxu0
      %v645 = vadd.f32 %v232, %v644
      %v646 = vpop.f32.mrf.mxu0
      %v647 = vadd.f32 %v232, %v646
      %648 = vmatmul.bf16.gmra.mxu0 %v292
      %v649 = vpop.f32.mrf.mxu0
      %v650 = vadd.f32 %v232, %v649
      %v651 = vpop.f32.mrf.mxu0
      %v652 = vadd.f32 %v232, %v651
      %653 = vmatmul.bf16.gmra.mxu0 %v293
      %v654 = vpop.f32.mrf.mxu0
      %v655 = vadd.f32 %v232, %v654
      %v656 = vpop.f32.mrf.mxu0
      %v657 = vadd.f32 %v232, %v656
      %658 = vmatmul.bf16.gmra.mxu0 %v294
      %v659 = vpop.f32.mrf.mxu0
      %v660 = vadd.f32 %v232, %v659
      %v661 = vpop.f32.mrf.mxu0
      %v662 = vadd.f32 %v232, %v661
      %663 = vmatmul.bf16.gmra.mxu0 %v295
      %v664 = vpop.f32.mrf.mxu0
      %v665 = vadd.f32 %v232, %v664
      %v666 = vpop.f32.mrf.mxu0
      %v667 = vadd.f32 %v232, %v666
      %668 = vmatmul.bf16.gmra.mxu0 %v296
      %v669 = vpop.f32.mrf.mxu0
      %v670 = vadd.f32 %v232, %v669
      %v671 = vpop.f32.mrf.mxu0
      %v672 = vadd.f32 %v232, %v671
      %673 = vmatmul.bf16.gmra.mxu0 %v297
      %v674 = vpop.f32.mrf.mxu0
      %v675 = vadd.f32 %v232, %v674
      %v676 = vpop.f32.mrf.mxu0
      %v677 = vadd.f32 %v232, %v676
      %678 = vmatmul.bf16.gmra.mxu0 %v298
      %v679 = vpop.f32.mrf.mxu0
      %v680 = vadd.f32 %v232, %v679
      %v681 = vpop.f32.mrf.mxu0
      %v682 = vadd.f32 %v232, %v681
      %683 = vmatmul.bf16.gmra.mxu0 %v299
      %v684 = vpop.f32.mrf.mxu0
      %v685 = vadd.f32 %v232, %v684
      %v686 = vpop.f32.mrf.mxu0
      %v687 = vadd.f32 %v232, %v686
      %688 = vmatmul.bf16.gmra.mxu0 %v300
      %v689 = vpop.f32.mrf.mxu0
      %v690 = vadd.f32 %v232, %v689
      %v691 = vpop.f32.mrf.mxu0
      %692 = vdwg.mxu0
      %693 = vmatpush.bf16.msra.mxu0 %v441
      %694 = vmatpush.bf16.msra.mxu0 %v437
      %695 = vmatpush.bf16.msra.mxu0 %v433
      %696 = vmatpush.bf16.msra.mxu0 %v429
      %697 = vmatpush.bf16.msra.mxu0 %v425
      %698 = vmatpush.bf16.msra.mxu0 %v421
      %699 = vmatpush.bf16.msra.mxu0 %v417
      %700 = vmatpush.bf16.msra.mxu0 %v413
      %701 = vmatmul.bf16.gmra.mxu0 %v288
      %v702 = vpop.f32.mrf.mxu0
      %v703 = vadd.f32 %v233, %v702
      %v704 = vpop.f32.mrf.mxu0
      %v705 = vadd.f32 %v233, %v704
      %706 = vmatmul.bf16.gmra.mxu0 %v289
      %v707 = vpop.f32.mrf.mxu0
      %v708 = vadd.f32 %v233, %v707
      %v709 = vpop.f32.mrf.mxu0
      %v710 = vadd.f32 %v233, %v709
      %711 = vmatmul.bf16.gmra.mxu0 %v290
      %v712 = vpop.f32.mrf.mxu0
      %v713 = vadd.f32 %v233, %v712
      %v714 = vpop.f32.mrf.mxu0
      %v715 = vadd.f32 %v233, %v714
      %716 = vmatmul.bf16.gmra.mxu0 %v291
      %v717 = vpop.f32.mrf.mxu0
      %v718 = vadd.f32 %v233, %v717
      %v719 = vpop.f32.mrf.mxu0
      %v720 = vadd.f32 %v233, %v719
      %721 = vmatmul.bf16.gmra.mxu0 %v292
      %v722 = vpop.f32.mrf.mxu0
      %v723 = vadd.f32 %v233, %v722
      %v724 = vpop.f32.mrf.mxu0
      %v725 = vadd.f32 %v233, %v724
      %726 = vmatmul.bf16.gmra.mxu0 %v293
      %v727 = vpop.f32.mrf.mxu0
      %v728 = vadd.f32 %v233, %v727
      %v729 = vpop.f32.mrf.mxu0
      %v730 = vadd.f32 %v233, %v729
      %731 = vmatmul.bf16.gmra.mxu0 %v294
      %v732 = vpop.f32.mrf.mxu0
      %v733 = vadd.f32 %v233, %v732
      %v734 = vpop.f32.mrf.mxu0
      %v735 = vadd.f32 %v233, %v734
      %736 = vmatmul.bf16.gmra.mxu0 %v295
      %v737 = vpop.f32.mrf.mxu0
      %v738 = vadd.f32 %v233, %v737
      %v739 = vpop.f32.mrf.mxu0
      %v740 = vadd.f32 %v233, %v739
      %741 = vmatmul.bf16.gmra.mxu0 %v296
      %v742 = vpop.f32.mrf.mxu0
      %v743 = vadd.f32 %v233, %v742
      %v744 = vpop.f32.mrf.mxu0
      %v745 = vadd.f32 %v233, %v744
      %746 = vmatmul.bf16.gmra.mxu0 %v297
      %v747 = vpop.f32.mrf.mxu0
      %v748 = vadd.f32 %v233, %v747
      %v749 = vpop.f32.mrf.mxu0
      %v750 = vadd.f32 %v233, %v749
      %751 = vmatmul.bf16.gmra.mxu0 %v298
      %v752 = vpop.f32.mrf.mxu0
      %v753 = vadd.f32 %v233, %v752
      %v754 = vpop.f32.mrf.mxu0
      %v755 = vadd.f32 %v233, %v754
      %756 = vmatmul.bf16.gmra.mxu0 %v299
      %v757 = vpop.f32.mrf.mxu0
      %v758 = vadd.f32 %v233, %v757
      %v759 = vpop.f32.mrf.mxu0
      %v760 = vadd.f32 %v233, %v759
      %761 = vmatmul.bf16.gmra.mxu0 %v300
      %v762 = vpop.f32.mrf.mxu0
      %v763 = vadd.f32 %v233, %v762
      %v764 = vpop.f32.mrf.mxu0
      %765 = vdwg.mxu0
      %v766 = vmax.f32 %v484, 0.0
      %v767 = vmax.f32 %v557, 0.0
      %v768 = vmax.f32 %v630, 0.0
      %v769 = vmax.f32 %v703, 0.0
      %v770 = vmax.f32 %v486, 0.0
      %v771 = vmax.f32 %v559, 0.0
      %v772 = vmax.f32 %v632, 0.0
      %v773 = vmax.f32 %v705, 0.0
      %v774 = vmax.f32 %v489, 0.0
      %v775 = vmax.f32 %v562, 0.0
      %v776 = vmax.f32 %v635, 0.0
      %v777 = vmax.f32 %v708, 0.0
      %v778 = vmax.f32 %v491, 0.0
      %v779 = vmax.f32 %v564, 0.0
      %v780 = vmax.f32 %v637, 0.0
      %v781 = vmax.f32 %v710, 0.0
      %v782 = vmax.f32 %v494, 0.0
      %v783 = vmax.f32 %v567, 0.0
      %v784 = vmax.f32 %v640, 0.0
      %v785 = vmax.f32 %v713, 0.0
      %v786 = vmax.f32 %v496, 0.0
      %v787 = vmax.f32 %v569, 0.0
      %v788 = vmax.f32 %v642, 0.0
      %v789 = vmax.f32 %v715, 0.0
      %v790 = vmax.f32 %v499, 0.0
      %v791 = vmax.f32 %v572, 0.0
      %v792 = vmax.f32 %v645, 0.0
      %v793 = vmax.f32 %v718, 0.0
      %v794 = vmax.f32 %v501, 0.0
      %v795 = vmax.f32 %v574, 0.0
      %v796 = vmax.f32 %v647, 0.0
      %v797 = vmax.f32 %v720, 0.0
      %v798 = vmax.f32 %v504, 0.0
      %v799 = vmax.f32 %v577, 0.0
      %v800 = vmax.f32 %v650, 0.0
      %v801 = vmax.f32 %v723, 0.0
      %v802 = vmax.f32 %v506, 0.0
      %v803 = vmax.f32 %v579, 0.0
      %v804 = vmax.f32 %v652, 0.0
      %v805 = vmax.f32 %v725, 0.0
      %v806 = vmax.f32 %v509, 0.0
      %v807 = vmax.f32 %v582, 0.0
      %v808 = vmax.f32 %v655, 0.0
      %v809 = vmax.f32 %v728, 0.0
      %v810 = vmax.f32 %v511, 0.0
      %v811 = vmax.f32 %v584, 0.0
      %v812 = vmax.f32 %v657, 0.0
      %v813 = vmax.f32 %v730, 0.0
      %v814 = vmax.f32 %v514, 0.0
      %v815 = vmax.f32 %v587, 0.0
      %v816 = vmax.f32 %v660, 0.0
      %v817 = vmax.f32 %v733, 0.0
      %v818 = vmax.f32 %v516, 0.0
      %v819 = vmax.f32 %v589, 0.0
      %v820 = vmax.f32 %v662, 0.0
      %v821 = vmax.f32 %v735, 0.0
      %v822 = vmax.f32 %v519, 0.0
      %v823 = vmax.f32 %v592, 0.0
      %v824 = vmax.f32 %v665, 0.0
      %v825 = vmax.f32 %v738, 0.0
      %v826 = vmax.f32 %v521, 0.0
      %v827 = vmax.f32 %v594, 0.0
      %v828 = vmax.f32 %v667, 0.0
      %v829 = vmax.f32 %v740, 0.0
      %v830 = vmax.f32 %v524, 0.0
      %v831 = vmax.f32 %v597, 0.0
      %v832 = vmax.f32 %v670, 0.0
      %v833 = vmax.f32 %v743, 0.0
      %v834 = vmax.f32 %v526, 0.0
      %v835 = vmax.f32 %v599, 0.0
      %v836 = vmax.f32 %v672, 0.0
      %v837 = vmax.f32 %v745, 0.0
      %v838 = vmax.f32 %v529, 0.0
      %v839 = vmax.f32 %v602, 0.0
      %v840 = vmax.f32 %v675, 0.0
      %v841 = vmax.f32 %v748, 0.0
      %v842 = vmax.f32 %v531, 0.0
      %v843 = vmax.f32 %v604, 0.0
      %v844 = vmax.f32 %v677, 0.0
      %v845 = vmax.f32 %v750, 0.0
      %v846 = vmax.f32 %v534, 0.0
      %v847 = vmax.f32 %v607, 0.0
      %v848 = vmax.f32 %v680, 0.0
      %v849 = vmax.f32 %v753, 0.0
      %v850 = vmax.f32 %v536, 0.0
      %v851 = vmax.f32 %v609, 0.0
      %v852 = vmax.f32 %v682, 0.0
      %v853 = vmax.f32 %v755, 0.0
      %v854 = vmax.f32 %v539, 0.0
      %v855 = vmax.f32 %v612, 0.0
      %v856 = vmax.f32 %v685, 0.0
      %v857 = vmax.f32 %v758, 0.0
      %v858 = vmax.f32 %v541, 0.0
      %v859 = vmax.f32 %v614, 0.0
      %v860 = vmax.f32 %v687, 0.0
      %v861 = vmax.f32 %v760, 0.0
      %v862 = vmax.f32 %v544, 0.0
      %v863 = vmax.f32 %v617, 0.0
      %v864 = vmax.f32 %v690, 0.0
      %v865 = vmax.f32 %v763, 0.0
      %v866 = vmax.f32 %v766, %v767
      %v867 = vmax.f32 %v770, %v771
      %v868 = vmax.f32 %v774, %v775
      %v869 = vmax.f32 %v778, %v779
      %v870 = vmax.f32 %v782, %v783
      %v871 = vmax.f32 %v786, %v787
      %v872 = vmax.f32 %v790, %v791
      %v873 = vmax.f32 %v794, %v795
      %v874 = vmax.f32 %v798, %v799
      %v875 = vmax.f32 %v802, %v803
      %v876 = vmax.f32 %v806, %v807
      %v877 = vmax.f32 %v810, %v811
      %v878 = vmax.f32 %v814, %v815
      %v879 = vmax.f32 %v818, %v819
      %v880 = vmax.f32 %v822, %v823
      %v881 = vmax.f32 %v826, %v827
      %v882 = vmax.f32 %v830, %v831
      %v883 = vmax.f32 %v834, %v835
      %v884 = vmax.f32 %v838, %v839
      %v885 = vmax.f32 %v842, %v843
      %v886 = vmax.f32 %v846, %v847
      %v887 = vmax.f32 %v850, %v851
      %v888 = vmax.f32 %v854, %v855
      %v889 = vmax.f32 %v858, %v859
      %v890 = vmax.f32 %v862, %v863
      %v891 = vmax.f32 %v768, %v769
      %v892 = vmax.f32 %v772, %v773
      %v893 = vmax.f32 %v776, %v777
      %v894 = vmax.f32 %v780, %v781
      %v895 = vmax.f32 %v784, %v785
      %v896 = vmax.f32 %v788, %v789
      %v897 = vmax.f32 %v792, %v793
      %v898 = vmax.f32 %v796, %v797
      %v899 = vmax.f32 %v800, %v801
      %v900 = vmax.f32 %v804, %v805
      %v901 = vmax.f32 %v808, %v809
      %v902 = vmax.f32 %v812, %v813
      %v903 = vmax.f32 %v816, %v817
      %v904 = vmax.f32 %v820, %v821
      %v905 = vmax.f32 %v824, %v825
      %v906 = vmax.f32 %v828, %v829
      %v907 = vmax.f32 %v832, %v833
      %v908 = vmax.f32 %v836, %v837
      %v909 = vmax.f32 %v840, %v841
      %v910 = vmax.f32 %v844, %v845
      %v911 = vmax.f32 %v848, %v849
      %v912 = vmax.f32 %v852, %v853
      %v913 = vmax.f32 %v856, %v857
      %v914 = vmax.f32 %v860, %v861
      %v915 = vmax.f32 %v864, %v865
      %v916 = vmax.f32 %v866, %v891
      %v917 = vmax.f32 %v867, %v892
      %v918 = vmax.f32 %v868, %v893
      %v919 = vmax.f32 %v869, %v894
      %v920 = vmax.f32 %v870, %v895
      %v921 = vmax.f32 %v871, %v896
      %v922 = vmax.f32 %v872, %v897
      %v923 = vmax.f32 %v873, %v898
      %v924 = vmax.f32 %v874, %v899
      %v925 = vmax.f32 %v875, %v900
      %v926 = vmax.f32 %v876, %v901
      %v927 = vmax.f32 %v877, %v902
      %v928 = vmax.f32 %v878, %v903
      %v929 = vmax.f32 %v879, %v904
      %v930 = vmax.f32 %v880, %v905
      %v931 = vmax.f32 %v881, %v906
      %v932 = vmax.f32 %v882, %v907
      %v933 = vmax.f32 %v883, %v908
      %v934 = vmax.f32 %v884, %v909
      %v935 = vmax.f32 %v885, %v910
      %v936 = vmax.f32 %v886, %v911
      %v937 = vmax.f32 %v887, %v912
      %v938 = vmax.f32 %v888, %v913
      %v939 = vmax.f32 %v889, %v914
      %v940 = vmax.f32 %v890, %v915
      %v941 = vpack.c.bf16 %v916, %v916
      %v942 = vpack.c.bf16 %v917, %v917
      %v943 = vpack.c.bf16 %v918, %v918
      %v944 = vpack.c.bf16 %v919, %v919
      %v945 = vpack.c.bf16 %v920, %v920
      %v946 = vpack.c.bf16 %v921, %v921
      %v947 = vpack.c.bf16 %v922, %v922
      %v948 = vpack.c.bf16 %v923, %v923
      %v949 = vpack.c.bf16 %v924, %v924
      %v950 = vpack.c.bf16 %v925, %v925
      %v951 = vpack.c.bf16 %v926, %v926
      %v952 = vpack.c.bf16 %v927, %v927
      %v953 = vpack.c.bf16 %v928, %v928
      %v954 = vpack.c.bf16 %v929, %v929
      %v955 = vpack.c.bf16 %v930, %v930
      %v956 = vpack.c.bf16 %v931, %v931
      %v957 = vpack.c.bf16 %v932, %v932
      %v958 = vpack.c.bf16 %v933, %v933
      %v959 = vpack.c.bf16 %v934, %v934
      %v960 = vpack.c.bf16 %v935, %v935
      %v961 = vpack.c.bf16 %v936, %v936
      %v962 = vpack.c.bf16 %v937, %v937
      %v963 = vpack.c.bf16 %v938, %v938
      %v964 = vpack.c.bf16 %v939, %v939
      %v965 = vpack.c.bf16 %v940, %v940
      %966 = vst [vmem:[%s170] sm:$0xf] %v941
      %967 = vst [vmem:[%s170 + $0x4] sm:$0xf] %v942
      %968 = vst [vmem:[%s170 + $0x8] sm:$0xf] %v943
      %969 = vst [vmem:[%s170 + $0xc] sm:$0xf] %v944
      %970 = vst [vmem:[%s170 + $0x10] sm:$0xf] %v945
      %971 = vst [vmem:[%s170 + $0x14] sm:$0xf] %v946
      %972 = vst [vmem:[%s170 + $0x18] sm:$0xf] %v947
      %973 = vst [vmem:[%s170 + $0x1c] sm:$0xf] %v948
      %974 = vst [vmem:[%s170 + $0x20] sm:$0xf] %v949
      %975 = vst [vmem:[%s170 + $0x24] sm:$0xf] %v950
      %976 = vst [vmem:[%s170 + $0x28] sm:$0xf] %v951
      %977 = vst [vmem:[%s170 + $0x2c] sm:$0xf] %v952
      %978 = vst [vmem:[%s170 + $0x30] sm:$0xf] %v953
      %979 = vst [vmem:[%s170 + $0x34] sm:$0xf] %v954
      %980 = vst [vmem:[%s170 + $0x38] sm:$0xf] %v955
      %981 = vst [vmem:[%s170 + $0x3c] sm:$0xf] %v956
      %982 = vst [vmem:[%s170 + $0x40] sm:$0xf] %v957
      %983 = vst [vmem:[%s170 + $0x44] sm:$0xf] %v958
      %984 = vst [vmem:[%s170 + $0x48] sm:$0xf] %v959
      %985 = vst [vmem:[%s170 + $0x4c] sm:$0xf] %v960
      %986 = vst [vmem:[%s170 + $0x50] sm:$0xf] %v961
      %987 = vst [vmem:[%s170 + $0x54] sm:$0xf] %v962
      %988 = vst [vmem:[%s170 + $0x58] sm:$0xf] %v963
      %989 = vst [vmem:[%s170 + $0x5c] sm:$0xf] %v964
      %990 = vst [vmem:[%s170 + $0x60] sm:$0xf] %v965
      %p991 = scmp.lt.s32.totalorder %s14, 1
      %s992 = scalar_select %p991, %s14, 1
      %s993 = smul.addr %s992, 25
      %s994 = smul.addr %s993, 4
      %s995 = scalar_lea.vmem %s3, %s994
      // Predicated region
      $region33: #{lenet5_forward.3} parent=31 // pred_check
        %p996 = pneg %p100
      $region34: #{lenet5_forward.3} parent=31 // pred_check_branch
        %998 = sbr.rel (%p996) target = $region36
      $region35: #{lenet5_forward.3} parent=31 // pred_region
        _
      $region36: #{lenet5_forward.3} parent=31 // pred_fallthru
        _
    $region32: #{lenet5_forward.3} parent=5 // pred_fallthru
      _
    %p999 = scmp.le.s32.totalorder 2, %s9
    // Predicated region
    $region37: #{lenet5_forward.3} parent=5 // pred_check
      %p1000 = pneg %p999
    $region38: #{lenet5_forward.3} parent=5 // pred_check_branch
      %1002 = sbr.rel (%p1000) target = $region40
    $region39: #{lenet5_forward.3} parent=5 // pred_region
      %s1003 = ssub.s32 %s9, 2
      // Predicated region
      $region41: #{lenet5_forward.3} parent=39 // pred_check
        %p1004 = pneg %p106
      $region42: #{lenet5_forward.3} parent=39 // pred_check_branch
        %1006 = sbr.rel (%p1004) target = $region44
      $region43: #{lenet5_forward.3} parent=39 // pred_region
        %p1007 = scmp.lt.s32.totalorder %s15, 1
        %s1008 = scalar_select %p1007, %s15, 1
        %s1009 = smul.addr %s1008, 25
        %s1010 = smul.addr %s1009, 4
        %s1011 = scalar_lea.vmem %s3, %s1010
      $region44: #{lenet5_forward.3} parent=39 // pred_fallthru
        _
    $region40: #{lenet5_forward.3} parent=5 // pred_fallthru
      _
  $region6: #{lenet5_forward.3} parent=0 // loop_footer
    %s13 = sadd.s32 1, %s9
  $region7: #{lenet5_forward.3} parent=0 // loop_footer_branch
    %8 = sbr.rel target = $region3
  $region8: #{lenet5_forward.3} parent=0 // loop_exit
    _

// kernel: lenet5_forward.4
$region0: #{lenet5_forward.4}
  #allocation0 [shape = 'u32[]', space=smem, size = 0x4, offset = 0x4, fixed_abs, tag = 'smem constant byte address 0x4 - core index']
  #allocation1 [shape = 'u32[72,128]{1,0:T(1,128)}', space=vmem, size = 0x9000, scoped, tag = 'internal scratch']
  %s0 = inlined_call_operand.vmem [shape: bf16[2,32,256], index: 0, kind: input, shape index: {}]
  %s1 = inlined_call_operand.vmem [shape: bf16[256,512], index: 1, kind: input, shape index: {}]
  %s2 = inlined_call_operand.vmem [shape: f32[1,512], index: 2, kind: input, shape index: {}]
  %s3 = inlined_call_operand.vmem [shape: bf16[2,32,128], index: 3, kind: output, shape index: {}]
  %s4 = sld [smem:[#allocation0]]
  $region45: #{lenet5_forward.4} parent=0
    _
  %s6 = ssub.s32 1, %s4
  %s7 = scalar_select 0, %s6, %s4
  loop: start=0, step=1, limit=4
  $region2: #{lenet5_forward.4} parent=0 // loop_pre_header
    _
  $region3: #{lenet5_forward.4} parent=0 // loop_header
    %s9 = sphi 0, %s13
    %p10 = scmp.ge.s32.totalorder %s9, 4
    %s19 = sphi 0, %s21
    %s22 = sphi 0, %s19
    %s23 = sphi 0, %s22
    %s39 = sphi 0, %s23
    %s43 = sphi 0, %s43
    %s45 = sphi 0, %s43
    %s46 = sphi 0, %s45
    %s60 = sphi 0, %s46
    %s64 = sphi 0, %s64
    %s66 = sphi 0, %s64
    %s67 = sphi 0, %s66
    %s81 = sphi 0, %s67
    %s87 = sphi 0, %s89
    %s90 = sphi 0, %s87
    %s91 = sphi 0, %s90
    %s107 = sphi 0, %s91
  $region4: #{lenet5_forward.4} parent=0 // loop_header_branch
    %12 = sbr.rel (%p10) target = $region8
  $region5: #{lenet5_forward.4} parent=0 // loop_body
    %s14 = ssub.s32 %s9, 1
    %s15 = ssub.s32 %s9, 2
    %s16 = sadd.s32 %s9, 1
    %s17 = ssub.s32 %s9, %s16
    %p18 = scmp.eq.s32.totalorder %s17, 0
    %s20 = sadd.s32 %s19, 1
    %s21 = scalar_select %p18, %s19, %s20
    %p24 = pneg %p18
    %p25 = scmp.eq.s32.totalorder %s9, 1
    %p26 = por %p24, %p25
    %p27 = scmp.ne.s32.totalorder %s19, %s22
    %p28 = scmp.eq.s32.totalorder %s9, 0
    %p29 = por %p27, %p28
    %p30 = scmp.ne.s32.totalorder %s19, %s22
    %p31 = scmp.eq.s32.totalorder %s14, 1
    %p32 = por %p30, %p31
    %p33 = scmp.ne.s32.totalorder %s22, %s23
    %p34 = scmp.eq.s32.totalorder %s14, 0
    %p35 = por %p33, %p34
    %p36 = scmp.ne.s32.totalorder %s22, %s23
    %p37 = scmp.eq.s32.totalorder %s15, 1
    %p38 = por %p36, %p37
    %p40 = scmp.ne.s32.totalorder %s23, %s39
    %p41 = scmp.eq.s32.totalorder %s15, 0
    %p42 = por %p40, %p41
    %s44 = sadd.s32 %s43, 1
    %p47 = scmp.eq.s32.totalorder %s9, 1
    %p48 = scmp.ne.s32.totalorder %s43, %s45
    %p49 = scmp.eq.s32.totalorder %s9, 0
    %p50 = por %p48, %p49
    %p51 = scmp.ne.s32.totalorder %s43, %s45
    %p52 = scmp.eq.s32.totalorder %s14, 1
    %p53 = por %p51, %p52
    %p54 = scmp.ne.s32.totalorder %s45, %s46
    %p55 = scmp.eq.s32.totalorder %s14, 0
    %p56 = por %p54, %p55
    %p57 = scmp.ne.s32.totalorder %s45, %s46
    %p58 = scmp.eq.s32.totalorder %s15, 1
    %p59 = por %p57, %p58
    %p61 = scmp.ne.s32.totalorder %s46, %s60
    %p62 = scmp.eq.s32.totalorder %s15, 0
    %p63 = por %p61, %p62
    %s65 = sadd.s32 %s64, 1
    %p68 = scmp.eq.s32.totalorder %s9, 1
    %p69 = scmp.ne.s32.totalorder %s64, %s66
    %p70 = scmp.eq.s32.totalorder %s9, 0
    %p71 = por %p69, %p70
    %p72 = scmp.ne.s32.totalorder %s64, %s66
    %p73 = scmp.eq.s32.totalorder %s14, 1
    %p74 = por %p72, %p73
    %p75 = scmp.ne.s32.totalorder %s66, %s67
    %p76 = scmp.eq.s32.totalorder %s14, 0
    %p77 = por %p75, %p76
    %p78 = scmp.ne.s32.totalorder %s66, %s67
    %p79 = scmp.eq.s32.totalorder %s15, 1
    %p80 = por %p78, %p79
    %p82 = scmp.ne.s32.totalorder %s67, %s81
    %p83 = scmp.eq.s32.totalorder %s15, 0
    %p84 = por %p82, %p83
    %s85 = ssub.s32 %s9, %s16
    %p86 = scmp.eq.s32.totalorder %s85, 0
    %s88 = sadd.s32 %s87, 1
    %s89 = scalar_select %p86, %s87, %s88
    %p92 = pneg %p86
    %p93 = scmp.eq.s32.totalorder %s9, 1
    %p94 = por %p92, %p93
    %p95 = scmp.ne.s32.totalorder %s87, %s90
    %p96 = scmp.eq.s32.totalorder %s9, 0
    %p97 = por %p95, %p96
    %p98 = scmp.ne.s32.totalorder %s87, %s90
    %p99 = scmp.eq.s32.totalorder %s14, 1
    %p100 = por %p98, %p99
    %p101 = scmp.ne.s32.totalorder %s90, %s91
    %p102 = scmp.eq.s32.totalorder %s14, 0
    %p103 = por %p101, %p102
    %p104 = scmp.ne.s32.totalorder %s90, %s91
    %p105 = scmp.eq.s32.totalorder %s15, 1
    %p106 = por %p104, %p105
    %p108 = scmp.ne.s32.totalorder %s91, %s107
    %p109 = scmp.eq.s32.totalorder %s15, 0
    %p110 = por %p108, %p109
    %p111 = scmp.le.s32.totalorder 1, %s9
    %p112 = scmp.lt.s32.totalorder %s9, 3
    %p113 = pnand %p111, %p112
    %p114 = pneg %p113
    // Predicated region
    $region9: #{lenet5_forward.4} parent=5 // pred_check
      _
    $region10: #{lenet5_forward.4} parent=5 // pred_check_branch
      %116 = sbr.rel (%p113) target = $region12
    $region11: #{lenet5_forward.4} parent=5 // pred_region
      %s117 = ssub.s32 %s9, 1
      // Predicated region
      $region13: #{lenet5_forward.4} parent=11 // pred_check
        %p118 = pneg %p56
      $region14: #{lenet5_forward.4} parent=11 // pred_check_branch
        %120 = sbr.rel (%p118) target = $region16
      $region15: #{lenet5_forward.4} parent=11 // pred_region
        _
      $region16: #{lenet5_forward.4} parent=11 // pred_fallthru
        _
      // Predicated region
      $region17: #{lenet5_forward.4} parent=11 // pred_check
        %p121 = pneg %p77
      $region18: #{lenet5_forward.4} parent=11 // pred_check_branch
        %123 = sbr.rel (%p121) target = $region20
      $region19: #{lenet5_forward.4} parent=11 // pred_region
        _
      $region20: #{lenet5_forward.4} parent=11 // pred_fallthru
        _
    $region12: #{lenet5_forward.4} parent=5 // pred_fallthru
      _
    %p124 = scmp.lt.s32.totalorder %s9, 2
    // Predicated region
    $region21: #{lenet5_forward.4} parent=5 // pred_check
      %p125 = pneg %p124
    $region22: #{lenet5_forward.4} parent=5 // pred_check_branch
      %127 = sbr.rel (%p125) target = $region24
    $region23: #{lenet5_forward.4} parent=5 // pred_region
      // Predicated region
      $region25: #{lenet5_forward.4} parent=23 // pred_check
        %p128 = pneg %p29
      $region26: #{lenet5_forward.4} parent=23 // pred_check_branch
        %130 = sbr.rel (%p128) target = $region28
      $region27: #{lenet5_forward.4} parent=23 // pred_region
        %p131 = scmp.lt.s32.totalorder %s9, 1
        %s132 = scalar_select %p131, %s9, 1
        %s133 = smul.addr %s132, 8
        %s134 = smul.addr %s133, 4
        %s135 = scalar_lea.vmem %s0, %s134
      $region28: #{lenet5_forward.4} parent=23 // pred_fallthru
        _
    $region24: #{lenet5_forward.4} parent=5 // pred_fallthru
      _
    %p136 = scmp.le.s32.totalorder 1, %s9
    %p137 = scmp.lt.s32.totalorder %s9, 3
    %p138 = pnand %p136, %p137
    %p139 = pneg %p138
    // Predicated region
    $region29: #{lenet5_forward.4} parent=5 // pred_check
      _
    $region30: #{lenet5_forward.4} parent=5 // pred_check_branch
      %141 = sbr.rel (%p138) target = $region32
    $region31: #{lenet5_forward.4} parent=5 // pred_region
      %s142 = ssub.s32 %s9, 1
      %p143 = scmp.lt.s32.totalorder %s14, 1
      %s144 = scalar_select %p143, %s14, 1
      %s145 = smul.addr %s144, 8
      %s146 = smul.addr %s145, 4
      %s147 = scalar_lea.vmem %s0, %s146
      %p148 = pneg %p35
      %p149 = pneg %p32
      %p150 = pneg %p56
      %p151 = pneg %p53
      %p152 = pneg %p77
      %p153 = pneg %p74
      %p154 = pneg %p103
      %p155 = pneg %p100
      %p156 = scmp.lt.s32.totalorder %s14, 1
      %s157 = scalar_select %p156, %s14, 1
      %s158 = smul.addr %s157, 4
      %s159 = smul.addr %s158, 4
      %s160 = scalar_lea.vmem %s3, %s159
      %p161 = scmp.lt.s32.totalorder %s14, 1
      %s162 = scalar_select %p161, %s14, 1
      %s163 = smul.addr %s162, 8
      %s164 = smul.addr %s163, 4
      %s165 = scalar_lea.vmem %s0, %s164
      %p166 = scmp.lt.s32.totalorder %s14, 1
      %s167 = scalar_select %p166, %s14, 1
      %s168 = smul.addr %s167, 4
      %s169 = smul.addr %s168, 4
      %s170 = scalar_lea.vmem %s3, %s169
      %v171 = vld [vmem:[%s165] sm:$0xff]
      %v172 = vld [vmem:[%s165 + $0x8] sm:$0xff]
      %v173 = vld [vmem:[%s165 + $0x10] sm:$0xff]
      %v174 = vld [vmem:[%s165 + $0x18] sm:$0xff]
      %v175 = vld [vmem:[%s1] sm:$0xff]
      %v176 = vld [vmem:[%s1 + $0x8] sm:$0xff]
      %v177 = vld [vmem:[%s1 + $0x10] sm:$0xff]
      %v178 = vld [vmem:[%s1 + $0x18] sm:$0xff]
      %v179 = vld [vmem:[%s1 + $0x20] sm:$0xff]
      %v180 = vld [vmem:[%s1 + $0x28] sm:$0xff]
      %v181 = vld [vmem:[%s1 + $0x30] sm:$0xff]
      %v182 = vld [vmem:[%s1 + $0x38] sm:$0xff]
      %v183 = vld [vmem:[%s1 + $0x40] sm:$0xff]
      %v184 = vld [vmem:[%s1 + $0x48] sm:$0xff]
      %v185 = vld [vmem:[%s1 + $0x50] sm:$0xff]
      %v186 = vld [vmem:[%s1 + $0x58] sm:$0xff]
      %v187 = vld [vmem:[%s1 + $0x60] sm:$0xff]
      %v188 = vld [vmem:[%s1 + $0x68] sm:$0xff]
      %v189 = vld [vmem:[%s1 + $0x70] sm:$0xff]
      %v190 = vld [vmem:[%s1 + $0x78] sm:$0xff]
      %v191 = vld [vmem:[%s1 + $0x80] sm:$0xff]
      %v192 = vld [vmem:[%s1 + $0x88] sm:$0xff]
      %v193 = vld [vmem:[%s1 + $0x90] sm:$0xff]
      %v194 = vld [vmem:[%s1 + $0x98] sm:$0xff]
      %v195 = vld [vmem:[%s1 + $0xa0] sm:$0xff]
      %v196 = vld [vmem:[%s1 + $0xa8] sm:$0xff]
      %v197 = vld [vmem:[%s1 + $0xb0] sm:$0xff]
      %v198 = vld [vmem:[%s1 + $0xb8] sm:$0xff]
      %v199 = vld [vmem:[%s1 + $0xc0] sm:$0xff]
      %v200 = vld [vmem:[%s1 + $0xc8] sm:$0xff]
      %v201 = vld [vmem:[%s1 + $0xd0] sm:$0xff]
      %v202 = vld [vmem:[%s1 + $0xd8] sm:$0xff]
      %v203 = vld [vmem:[%s1 + $0xe0] sm:$0xff]
      %v204 = vld [vmem:[%s1 + $0xe8] sm:$0xff]
      %v205 = vld [vmem:[%s1 + $0xf0] sm:$0xff]
      %v206 = vld [vmem:[%s1 + $0xf8] sm:$0xff]
      %v207 = vld [vmem:[%s1 + $0x100] sm:$0xff]
      %v208 = vld [vmem:[%s1 + $0x108] sm:$0xff]
      %v209 = vld [vmem:[%s1 + $0x110] sm:$0xff]
      %v210 = vld [vmem:[%s1 + $0x118] sm:$0xff]
      %v211 = vld [vmem:[%s1 + $0x120] sm:$0xff]
      %v212 = vld [vmem:[%s1 + $0x128] sm:$0xff]
      %v213 = vld [vmem:[%s1 + $0x130] sm:$0xff]
      %v214 = vld [vmem:[%s1 + $0x138] sm:$0xff]
      %v215 = vld [vmem:[%s1 + $0x140] sm:$0xff]
      %v216 = vld [vmem:[%s1 + $0x148] sm:$0xff]
      %v217 = vld [vmem:[%s1 + $0x150] sm:$0xff]
      %v218 = vld [vmem:[%s1 + $0x158] sm:$0xff]
      %v219 = vld [vmem:[%s1 + $0x160] sm:$0xff]
      %v220 = vld [vmem:[%s1 + $0x168] sm:$0xff]
      %v221 = vld [vmem:[%s1 + $0x170] sm:$0xff]
      %v222 = vld [vmem:[%s1 + $0x178] sm:$0xff]
      %v223 = vld [vmem:[%s1 + $0x180] sm:$0xff]
      %v224 = vld [vmem:[%s1 + $0x188] sm:$0xff]
      %v225 = vld [vmem:[%s1 + $0x190] sm:$0xff]
      %v226 = vld [vmem:[%s1 + $0x198] sm:$0xff]
      %v227 = vld [vmem:[%s1 + $0x1a0] sm:$0xff]
      %v228 = vld [vmem:[%s1 + $0x1a8] sm:$0xff]
      %v229 = vld [vmem:[%s1 + $0x1b0] sm:$0xff]
      %v230 = vld [vmem:[%s1 + $0x1b8] sm:$0xff]
      %v231 = vld [vmem:[%s1 + $0x1c0] sm:$0xff]
      %v232 = vld [vmem:[%s1 + $0x1c8] sm:$0xff]
      %v233 = vld [vmem:[%s1 + $0x1d0] sm:$0xff]
      %v234 = vld [vmem:[%s1 + $0x1d8] sm:$0xff]
      %v235 = vld [vmem:[%s1 + $0x1e0] sm:$0xff]
      %v236 = vld [vmem:[%s1 + $0x1e8] sm:$0xff]
      %v237 = vld [vmem:[%s1 + $0x1f0] sm:$0xff]
      %v238 = vld [vmem:[%s1 + $0x1f8] sm:$0xff]
      %v239 = vld [vmem:[%s2] sm:$0xf]
      %v241 = vperm.slane %v239, 0
      %v242 = vperm.slane %v239, 1
      %v243 = vperm.slane %v239, 2
      %v244 = vperm.slane %v239, 3
      %v253 = vunpack.c.l.b16 %v171
      %v254 = vunpack.c.h.b16 %v171
      %v255 = vunpack.c.l.b16 %v172
      %v256 = vunpack.c.h.b16 %v172
      %v257 = vunpack.c.l.b16 %v173
      %v258 = vunpack.c.h.b16 %v173
      %v259 = vunpack.c.l.b16 %v174
      %v260 = vunpack.c.h.b16 %v174
      %v261 = vpack.c.b16 %v255, %v253
      %v262 = vpack.c.b16 %v256, %v254
      %v263 = vpack.c.b16 %v259, %v257
      %v264 = vpack.c.b16 %v260, %v258
      %v333 = vunpack.c.l.b16 %v175
      %v334 = vunpack.c.h.b16 %v175
      %v335 = vunpack.c.l.b16 %v176
      %v336 = vunpack.c.h.b16 %v176
      %v337 = vunpack.c.l.b16 %v177
      %v338 = vunpack.c.h.b16 %v177
      %v339 = vunpack.c.l.b16 %v178
      %v340 = vunpack.c.h.b16 %v178
      %v341 = vunpack.c.l.b16 %v179
      %v342 = vunpack.c.h.b16 %v179
      %v343 = vunpack.c.l.b16 %v180
      %v344 = vunpack.c.h.b16 %v180
      %v345 = vunpack.c.l.b16 %v181
      %v346 = vunpack.c.h.b16 %v181
      %v347 = vunpack.c.l.b16 %v182
      %v348 = vunpack.c.h.b16 %v182
      %v349 = vunpack.c.l.b16 %v183
      %v350 = vunpack.c.h.b16 %v183
      %v351 = vunpack.c.l.b16 %v184
      %v352 = vunpack.c.h.b16 %v184
      %v353 = vunpack.c.l.b16 %v185
      %v354 = vunpack.c.h.b16 %v185
      %v355 = vunpack.c.l.b16 %v186
      %v356 = vunpack.c.h.b16 %v186
      %v357 = vunpack.c.l.b16 %v187
      %v358 = vunpack.c.h.b16 %v187
      %v359 = vunpack.c.l.b16 %v188
      %v360 = vunpack.c.h.b16 %v188
      %v361 = vunpack.c.l.b16 %v189
      %v362 = vunpack.c.h.b16 %v189
      %v363 = vunpack.c.l.b16 %v190
      %v364 = vunpack.c.h.b16 %v190
      %v365 = vunpack.c.l.b16 %v191
      %v366 = vunpack.c.h.b16 %v191
      %v367 = vunpack.c.l.b16 %v192
      %v368 = vunpack.c.h.b16 %v192
      %v369 = vunpack.c.l.b16 %v193
      %v370 = vunpack.c.h.b16 %v193
      %v371 = vunpack.c.l.b16 %v194
      %v372 = vunpack.c.h.b16 %v194
      %v373 = vunpack.c.l.b16 %v195
      %v374 = vunpack.c.h.b16 %v195
      %v375 = vunpack.c.l.b16 %v196
      %v376 = vunpack.c.h.b16 %v196
      %v377 = vunpack.c.l.b16 %v197
      %v378 = vunpack.c.h.b16 %v197
      %v379 = vunpack.c.l.b16 %v198
      %v380 = vunpack.c.h.b16 %v198
      %v381 = vunpack.c.l.b16 %v199
      %v382 = vunpack.c.h.b16 %v199
      %v383 = vunpack.c.l.b16 %v200
      %v384 = vunpack.c.h.b16 %v200
      %v385 = vunpack.c.l.b16 %v201
      %v386 = vunpack.c.h.b16 %v201
      %v387 = vunpack.c.l.b16 %v202
      %v388 = vunpack.c.h.b16 %v202
      %v389 = vunpack.c.l.b16 %v203
      %v390 = vunpack.c.h.b16 %v203
      %v391 = vunpack.c.l.b16 %v204
      %v392 = vunpack.c.h.b16 %v204
      %v393 = vunpack.c.l.b16 %v205
      %v394 = vunpack.c.h.b16 %v205
      %v395 = vunpack.c.l.b16 %v206
      %v396 = vunpack.c.h.b16 %v206
      %v397 = vunpack.c.l.b16 %v207
      %v398 = vunpack.c.h.b16 %v207
      %v399 = vunpack.c.l.b16 %v208
      %v400 = vunpack.c.h.b16 %v208
      %v401 = vunpack.c.l.b16 %v209
      %v402 = vunpack.c.h.b16 %v209
      %v403 = vunpack.c.l.b16 %v210
      %v404 = vunpack.c.h.b16 %v210
      %v405 = vunpack.c.l.b16 %v211
      %v406 = vunpack.c.h.b16 %v211
      %v407 = vunpack.c.l.b16 %v212
      %v408 = vunpack.c.h.b16 %v212
      %v409 = vunpack.c.l.b16 %v213
      %v410 = vunpack.c.h.b16 %v213
      %v411 = vunpack.c.l.b16 %v214
      %v412 = vunpack.c.h.b16 %v214
      %v413 = vunpack.c.l.b16 %v215
      %v414 = vunpack.c.h.b16 %v215
      %v415 = vunpack.c.l.b16 %v216
      %v416 = vunpack.c.h.b16 %v216
      %v417 = vunpack.c.l.b16 %v217
      %v418 = vunpack.c.h.b16 %v217
      %v419 = vunpack.c.l.b16 %v218
      %v420 = vunpack.c.h.b16 %v218
      %v421 = vunpack.c.l.b16 %v219
      %v422 = vunpack.c.h.b16 %v219
      %v423 = vunpack.c.l.b16 %v220
      %v424 = vunpack.c.h.b16 %v220
      %v425 = vunpack.c.l.b16 %v221
      %v426 = vunpack.c.h.b16 %v221
      %v427 = vunpack.c.l.b16 %v222
      %v428 = vunpack.c.h.b16 %v222
      %v429 = vunpack.c.l.b16 %v223
      %v430 = vunpack.c.h.b16 %v223
      %v431 = vunpack.c.l.b16 %v224
      %v432 = vunpack.c.h.b16 %v224
      %v433 = vunpack.c.l.b16 %v225
      %v434 = vunpack.c.h.b16 %v225
      %v435 = vunpack.c.l.b16 %v226
      %v436 = vunpack.c.h.b16 %v226
      %v437 = vunpack.c.l.b16 %v227
      %v438 = vunpack.c.h.b16 %v227
      %v439 = vunpack.c.l.b16 %v228
      %v440 = vunpack.c.h.b16 %v228
      %v441 = vunpack.c.l.b16 %v229
      %v442 = vunpack.c.h.b16 %v229
      %v443 = vunpack.c.l.b16 %v230
      %v444 = vunpack.c.h.b16 %v230
      %v445 = vunpack.c.l.b16 %v231
      %v446 = vunpack.c.h.b16 %v231
      %v447 = vunpack.c.l.b16 %v232
      %v448 = vunpack.c.h.b16 %v232
      %v449 = vunpack.c.l.b16 %v233
      %v450 = vunpack.c.h.b16 %v233
      %v451 = vunpack.c.l.b16 %v234
      %v452 = vunpack.c.h.b16 %v234
      %v453 = vunpack.c.l.b16 %v235
      %v454 = vunpack.c.h.b16 %v235
      %v455 = vunpack.c.l.b16 %v236
      %v456 = vunpack.c.h.b16 %v236
      %v457 = vunpack.c.l.b16 %v237
      %v458 = vunpack.c.h.b16 %v237
      %v459 = vunpack.c.l.b16 %v238
      %v460 = vunpack.c.h.b16 %v238
      %v461 = vpack.c.b16 %v337, %v333
      %v462 = vpack.c.b16 %v338, %v334
      %v463 = vpack.c.b16 %v339, %v335
      %v464 = vpack.c.b16 %v340, %v336
      %v465 = vpack.c.b16 %v345, %v341
      %v466 = vpack.c.b16 %v346, %v342
      %v467 = vpack.c.b16 %v347, %v343
      %v468 = vpack.c.b16 %v348, %v344
      %v469 = vpack.c.b16 %v353, %v349
      %v470 = vpack.c.b16 %v354, %v350
      %v471 = vpack.c.b16 %v355, %v351
      %v472 = vpack.c.b16 %v356, %v352
      %v473 = vpack.c.b16 %v361, %v357
      %v474 = vpack.c.b16 %v362, %v358
      %v475 = vpack.c.b16 %v363, %v359
      %v476 = vpack.c.b16 %v364, %v360
      %v477 = vpack.c.b16 %v369, %v365
      %v478 = vpack.c.b16 %v370, %v366
      %v479 = vpack.c.b16 %v371, %v367
      %v480 = vpack.c.b16 %v372, %v368
      %v481 = vpack.c.b16 %v377, %v373
      %v482 = vpack.c.b16 %v378, %v374
      %v483 = vpack.c.b16 %v379, %v375
      %v484 = vpack.c.b16 %v380, %v376
      %v485 = vpack.c.b16 %v385, %v381
      %v486 = vpack.c.b16 %v386, %v382
      %v487 = vpack.c.b16 %v387, %v383
      %v488 = vpack.c.b16 %v388, %v384
      %v489 = vpack.c.b16 %v393, %v389
      %v490 = vpack.c.b16 %v394, %v390
      %v491 = vpack.c.b16 %v395, %v391
      %v492 = vpack.c.b16 %v396, %v392
      %v493 = vpack.c.b16 %v401, %v397
      %v494 = vpack.c.b16 %v402, %v398
      %v495 = vpack.c.b16 %v403, %v399
      %v496 = vpack.c.b16 %v404, %v400
      %v497 = vpack.c.b16 %v409, %v405
      %v498 = vpack.c.b16 %v410, %v406
      %v499 = vpack.c.b16 %v411, %v407
      %v500 = vpack.c.b16 %v412, %v408
      %v501 = vpack.c.b16 %v417, %v413
      %v502 = vpack.c.b16 %v418, %v414
      %v503 = vpack.c.b16 %v419, %v415
      %v504 = vpack.c.b16 %v420, %v416
      %v505 = vpack.c.b16 %v425, %v421
      %v506 = vpack.c.b16 %v426, %v422
      %v507 = vpack.c.b16 %v427, %v423
      %v508 = vpack.c.b16 %v428, %v424
      %v509 = vpack.c.b16 %v433, %v429
      %v510 = vpack.c.b16 %v434, %v430
      %v511 = vpack.c.b16 %v435, %v431
      %v512 = vpack.c.b16 %v436, %v432
      %v513 = vpack.c.b16 %v441, %v437
      %v514 = vpack.c.b16 %v442, %v438
      %v515 = vpack.c.b16 %v443, %v439
      %v516 = vpack.c.b16 %v444, %v440
      %v517 = vpack.c.b16 %v449, %v445
      %v518 = vpack.c.b16 %v450, %v446
      %v519 = vpack.c.b16 %v451, %v447
      %v520 = vpack.c.b16 %v452, %v448
      %v521 = vpack.c.b16 %v457, %v453
      %v522 = vpack.c.b16 %v458, %v454
      %v523 = vpack.c.b16 %v459, %v455
      %v524 = vpack.c.b16 %v460, %v456
      %589 = vmatpush.bf16.msra.mxu0 %v489
      %590 = vmatpush.bf16.msra.mxu0 %v485
      %591 = vmatpush.bf16.msra.mxu0 %v481
      %592 = vmatpush.bf16.msra.mxu0 %v477
      %593 = vmatpush.bf16.msra.mxu0 %v473
      %594 = vmatpush.bf16.msra.mxu0 %v469
      %595 = vmatpush.bf16.msra.mxu0 %v465
      %596 = vmatpush.bf16.msra.mxu0 %v461
      %597 = vmatmul.bf16.gmra.mxu0 %v261
      %v598 = vpop.f32.mrf.mxu0
      %v599 = vadd.f32 %v241, %v598
      %v600 = vpop.f32.mrf.mxu0
      %v601 = vadd.f32 %v241, %v600
      %602 = vmatmul.bf16.gmra.mxu0 %v263
      %v603 = vpop.f32.mrf.mxu0
      %v604 = vadd.f32 %v241, %v603
      %v605 = vpop.f32.mrf.mxu0
      %v606 = vadd.f32 %v241, %v605
      %607 = vdwg.mxu0
      %608 = vmatpush.bf16.msra.mxu0 %v521
      %609 = vmatpush.bf16.msra.mxu0 %v517
      %610 = vmatpush.bf16.msra.mxu0 %v513
      %611 = vmatpush.bf16.msra.mxu0 %v509
      %612 = vmatpush.bf16.msra.mxu0 %v505
      %613 = vmatpush.bf16.msra.mxu0 %v501
      %614 = vmatpush.bf16.msra.mxu0 %v497
      %615 = vmatpush.bf16.msra.mxu0 %v493
      %616 = vmatmul.bf16.gmra.mxu0 %v262
      %v617 = vpop.f32.mrf.mxu0
      %v618 = vadd.f32 %v599, %v617
      %v619 = vpop.f32.mrf.mxu0
      %v620 = vadd.f32 %v601, %v619
      %621 = vmatmul.bf16.gmra.mxu0 %v264
      %v622 = vpop.f32.mrf.mxu0
      %v623 = vadd.f32 %v604, %v622
      %v624 = vpop.f32.mrf.mxu0
      %v625 = vadd.f32 %v606, %v624
      %626 = vdwg.mxu0
      %627 = vmatpush.bf16.msra.mxu0 %v490
      %628 = vmatpush.bf16.msra.mxu0 %v486
      %629 = vmatpush.bf16.msra.mxu0 %v482
      %630 = vmatpush.bf16.msra.mxu0 %v478
      %631 = vmatpush.bf16.msra.mxu0 %v474
      %632 = vmatpush.bf16.msra.mxu0 %v470
      %633 = vmatpush.bf16.msra.mxu0 %v466
      %634 = vmatpush.bf16.msra.mxu0 %v462
      %635 = vmatmul.bf16.gmra.mxu0 %v261
      %v636 = vpop.f32.mrf.mxu0
      %v637 = vadd.f32 %v242, %v636
      %v638 = vpop.f32.mrf.mxu0
      %v639 = vadd.f32 %v242, %v638
      %640 = vmatmul.bf16.gmra.mxu0 %v263
      %v641 = vpop.f32.mrf.mxu0
      %v642 = vadd.f32 %v242, %v641
      %v643 = vpop.f32.mrf.mxu0
      %v644 = vadd.f32 %v242, %v643
      %645 = vdwg.mxu0
      %646 = vmatpush.bf16.msra.mxu0 %v522
      %647 = vmatpush.bf16.msra.mxu0 %v518
      %648 = vmatpush.bf16.msra.mxu0 %v514
      %649 = vmatpush.bf16.msra.mxu0 %v510
      %650 = vmatpush.bf16.msra.mxu0 %v506
      %651 = vmatpush.bf16.msra.mxu0 %v502
      %652 = vmatpush.bf16.msra.mxu0 %v498
      %653 = vmatpush.bf16.msra.mxu0 %v494
      %654 = vmatmul.bf16.gmra.mxu0 %v262
      %v655 = vpop.f32.mrf.mxu0
      %v656 = vadd.f32 %v637, %v655
      %v657 = vpop.f32.mrf.mxu0
      %v658 = vadd.f32 %v639, %v657
      %659 = vmatmul.bf16.gmra.mxu0 %v264
      %v660 = vpop.f32.mrf.mxu0
      %v661 = vadd.f32 %v642, %v660
      %v662 = vpop.f32.mrf.mxu0
      %v663 = vadd.f32 %v644, %v662
      %664 = vdwg.mxu0
      %665 = vmatpush.bf16.msra.mxu0 %v491
      %666 = vmatpush.bf16.msra.mxu0 %v487
      %667 = vmatpush.bf16.msra.mxu0 %v483
      %668 = vmatpush.bf16.msra.mxu0 %v479
      %669 = vmatpush.bf16.msra.mxu0 %v475
      %670 = vmatpush.bf16.msra.mxu0 %v471
      %671 = vmatpush.bf16.msra.mxu0 %v467
      %672 = vmatpush.bf16.msra.mxu0 %v463
      %673 = vmatmul.bf16.gmra.mxu0 %v261
      %v674 = vpop.f32.mrf.mxu0
      %v675 = vadd.f32 %v243, %v674
      %v676 = vpop.f32.mrf.mxu0
      %v677 = vadd.f32 %v243, %v676
      %678 = vmatmul.bf16.gmra.mxu0 %v263
      %v679 = vpop.f32.mrf.mxu0
      %v680 = vadd.f32 %v243, %v679
      %v681 = vpop.f32.mrf.mxu0
      %v682 = vadd.f32 %v243, %v681
      %683 = vdwg.mxu0
      %684 = vmatpush.bf16.msra.mxu0 %v523
      %685 = vmatpush.bf16.msra.mxu0 %v519
      %686 = vmatpush.bf16.msra.mxu0 %v515
      %687 = vmatpush.bf16.msra.mxu0 %v511
      %688 = vmatpush.bf16.msra.mxu0 %v507
      %689 = vmatpush.bf16.msra.mxu0 %v503
      %690 = vmatpush.bf16.msra.mxu0 %v499
      %691 = vmatpush.bf16.msra.mxu0 %v495
      %692 = vmatmul.bf16.gmra.mxu0 %v262
      %v693 = vpop.f32.mrf.mxu0
      %v694 = vadd.f32 %v675, %v693
      %v695 = vpop.f32.mrf.mxu0
      %v696 = vadd.f32 %v677, %v695
      %697 = vmatmul.bf16.gmra.mxu0 %v264
      %v698 = vpop.f32.mrf.mxu0
      %v699 = vadd.f32 %v680, %v698
      %v700 = vpop.f32.mrf.mxu0
      %v701 = vadd.f32 %v682, %v700
      %702 = vdwg.mxu0
      %703 = vmatpush.bf16.msra.mxu0 %v492
      %704 = vmatpush.bf16.msra.mxu0 %v488
      %705 = vmatpush.bf16.msra.mxu0 %v484
      %706 = vmatpush.bf16.msra.mxu0 %v480
      %707 = vmatpush.bf16.msra.mxu0 %v476
      %708 = vmatpush.bf16.msra.mxu0 %v472
      %709 = vmatpush.bf16.msra.mxu0 %v468
      %710 = vmatpush.bf16.msra.mxu0 %v464
      %711 = vmatmul.bf16.gmra.mxu0 %v261
      %v712 = vpop.f32.mrf.mxu0
      %v713 = vadd.f32 %v244, %v712
      %v714 = vpop.f32.mrf.mxu0
      %v715 = vadd.f32 %v244, %v714
      %716 = vmatmul.bf16.gmra.mxu0 %v263
      %v717 = vpop.f32.mrf.mxu0
      %v718 = vadd.f32 %v244, %v717
      %v719 = vpop.f32.mrf.mxu0
      %v720 = vadd.f32 %v244, %v719
      %721 = vdwg.mxu0
      %722 = vmatpush.bf16.msra.mxu0 %v524
      %723 = vmatpush.bf16.msra.mxu0 %v520
      %724 = vmatpush.bf16.msra.mxu0 %v516
      %725 = vmatpush.bf16.msra.mxu0 %v512
      %726 = vmatpush.bf16.msra.mxu0 %v508
      %727 = vmatpush.bf16.msra.mxu0 %v504
      %728 = vmatpush.bf16.msra.mxu0 %v500
      %729 = vmatpush.bf16.msra.mxu0 %v496
      %730 = vmatmul.bf16.gmra.mxu0 %v262
      %v731 = vpop.f32.mrf.mxu0
      %v732 = vadd.f32 %v713, %v731
      %v733 = vpop.f32.mrf.mxu0
      %v734 = vadd.f32 %v715, %v733
      %735 = vmatmul.bf16.gmra.mxu0 %v264
      %v736 = vpop.f32.mrf.mxu0
      %v737 = vadd.f32 %v718, %v736
      %v738 = vpop.f32.mrf.mxu0
      %v739 = vadd.f32 %v720, %v738
      %740 = vdwg.mxu0
      %v741 = vmax.f32 %v618, 0.0
      %v742 = vmax.f32 %v656, 0.0
      %v743 = vmax.f32 %v694, 0.0
      %v744 = vmax.f32 %v732, 0.0
      %v745 = vmax.f32 %v620, 0.0
      %v746 = vmax.f32 %v658, 0.0
      %v747 = vmax.f32 %v696, 0.0
      %v748 = vmax.f32 %v734, 0.0
      %v749 = vmax.f32 %v623, 0.0
      %v750 = vmax.f32 %v661, 0.0
      %v751 = vmax.f32 %v699, 0.0
      %v752 = vmax.f32 %v737, 0.0
      %v753 = vmax.f32 %v625, 0.0
      %v754 = vmax.f32 %v663, 0.0
      %v755 = vmax.f32 %v701, 0.0
      %v756 = vmax.f32 %v739, 0.0
      %v757 = vmax.f32 %v741, %v742
      %v758 = vmax.f32 %v745, %v746
      %v759 = vmax.f32 %v749, %v750
      %v760 = vmax.f32 %v753, %v754
      %v761 = vmax.f32 %v743, %v744
      %v762 = vmax.f32 %v747, %v748
      %v763 = vmax.f32 %v751, %v752
      %v764 = vmax.f32 %v755, %v756
      %v765 = vmax.f32 %v757, %v761
      %v766 = vmax.f32 %v758, %v762
      %v767 = vmax.f32 %v759, %v763
      %v768 = vmax.f32 %v760, %v764
      %v769 = vpack.c.bf16 %v765, %v765
      %v770 = vpack.c.bf16 %v766, %v766
      %v771 = vpack.c.bf16 %v767, %v767
      %v772 = vpack.c.bf16 %v768, %v768
      %773 = vst [vmem:[%s170] sm:$0xf] %v769
      %774 = vst [vmem:[%s170 + $0x4] sm:$0xf] %v770
      %775 = vst [vmem:[%s170 + $0x8] sm:$0xf] %v771
      %776 = vst [vmem:[%s170 + $0xc] sm:$0xf] %v772
      %p777 = scmp.lt.s32.totalorder %s14, 1
      %s778 = scalar_select %p777, %s14, 1
      %s779 = smul.addr %s778, 4
      %s780 = smul.addr %s779, 4
      %s781 = scalar_lea.vmem %s3, %s780
      // Predicated region
      $region33: #{lenet5_forward.4} parent=31 // pred_check
        %p782 = pneg %p100
      $region34: #{lenet5_forward.4} parent=31 // pred_check_branch
        %784 = sbr.rel (%p782) target = $region36
      $region35: #{lenet5_forward.4} parent=31 // pred_region
        _
      $region36: #{lenet5_forward.4} parent=31 // pred_fallthru
        _
    $region32: #{lenet5_forward.4} parent=5 // pred_fallthru
      _
    %p785 = scmp.le.s32.totalorder 2, %s9
    // Predicated region
    $region37: #{lenet5_forward.4} parent=5 // pred_check
      %p786 = pneg %p785
    $region38: #{lenet5_forward.4} parent=5 // pred_check_branch
      %788 = sbr.rel (%p786) target = $region40
    $region39: #{lenet5_forward.4} parent=5 // pred_region
      %s789 = ssub.s32 %s9, 2
      // Predicated region
      $region41: #{lenet5_forward.4} parent=39 // pred_check
        %p790 = pneg %p106
      $region42: #{lenet5_forward.4} parent=39 // pred_check_branch
        %792 = sbr.rel (%p790) target = $region44
      $region43: #{lenet5_forward.4} parent=39 // pred_region
        %p793 = scmp.lt.s32.totalorder %s15, 1
        %s794 = scalar_select %p793, %s15, 1
        %s795 = smul.addr %s794, 4
        %s796 = smul.addr %s795, 4
        %s797 = scalar_lea.vmem %s3, %s796
      $region44: #{lenet5_forward.4} parent=39 // pred_fallthru
        _
    $region40: #{lenet5_forward.4} parent=5 // pred_fallthru
      _
  $region6: #{lenet5_forward.4} parent=0 // loop_footer
    %s13 = sadd.s32 1, %s9
  $region7: #{lenet5_forward.4} parent=0 // loop_footer_branch
    %8 = sbr.rel target = $region3
  $region8: #{lenet5_forward.4} parent=0 // loop_exit
    _

// kernel: lenet5_forward.5
$region0: #{lenet5_forward.5}
  #allocation0 [shape = 'u32[]', space=smem, size = 0x4, offset = 0x4, fixed_abs, tag = 'smem constant byte address 0x4 - core index']
  #allocation1 [shape = 'u32[72,128]{1,0:T(1,128)}', space=vmem, size = 0x9000, scoped, tag = 'internal scratch']
  %s0 = inlined_call_operand.vmem [shape: bf16[2,512], index: 0, kind: input, shape index: {}]
  %s1 = inlined_call_operand.vmem [shape: bf16[512,128], index: 1, kind: input, shape index: {}]
  %s2 = inlined_call_operand.vmem [shape: f32[1,128], index: 2, kind: input, shape index: {}]
  %s3 = inlined_call_operand.vmem [shape: bf16[128,128], index: 3, kind: input, shape index: {}]
  %s4 = inlined_call_operand.vmem [shape: f32[1,128], index: 4, kind: input, shape index: {}]
  %s5 = inlined_call_operand.vmem [shape: bf16[128,128], index: 5, kind: input, shape index: {}]
  %s6 = inlined_call_operand.vmem [shape: f32[1,128], index: 6, kind: input, shape index: {}]
  %s7 = inlined_call_operand.hbm [shape: f32[2,128], index: 7, kind: output, shape index: {}]
  %s8 = sld [smem:[#allocation0]]
  $region38: #{lenet5_forward.5} parent=0
    _
  %s10 = ssub.s32 1, %s8
  %s11 = scalar_select 0, %s10, %s8
  $region1: #{lenet5_forward.5} parent=0
    #allocation2 [shape = 'u8[1024]{0}', space=vmem, size = 0x400, scoped, tag = 'output window, operand 0, single buffered']
    #allocation3 [shape = 's32[1]{0}', space=sflag, size = 0x4, scoped, tag = 'scoped memory for lenet5_forward.5']
    %12 = vsyncpa [#allocation3], 0
    // Predicated region
    $region2: #{lenet5_forward.5} parent=1 // pred_check
      _
    $region3: #{lenet5_forward.5} parent=1 // pred_check_branch
      %14 = sbr.rel (0) target = $region5
    $region4: #{lenet5_forward.5} parent=1 // pred_region
      _
    $region5: #{lenet5_forward.5} parent=1 // pred_fallthru
      _
    // Predicated region
    $region6: #{lenet5_forward.5} parent=1 // pred_check
      _
    $region7: #{lenet5_forward.5} parent=1 // pred_check_branch
      %16 = sbr.rel (0) target = $region9
    $region8: #{lenet5_forward.5} parent=1 // pred_region
      _
    $region9: #{lenet5_forward.5} parent=1 // pred_fallthru
      _
    // Predicated region
    $region10: #{lenet5_forward.5} parent=1 // pred_check
      _
    $region11: #{lenet5_forward.5} parent=1 // pred_check_branch
      %18 = sbr.rel (0) target = $region13
    $region12: #{lenet5_forward.5} parent=1 // pred_region
      _
    $region13: #{lenet5_forward.5} parent=1 // pred_fallthru
      _
    // Predicated region
    $region14: #{lenet5_forward.5} parent=1 // pred_check
      _
    $region15: #{lenet5_forward.5} parent=1 // pred_check_branch
      %20 = sbr.rel (0) target = $region17
    $region16: #{lenet5_forward.5} parent=1 // pred_region
      _
    $region17: #{lenet5_forward.5} parent=1 // pred_fallthru
      _
    // Predicated region
    $region18: #{lenet5_forward.5} parent=1 // pred_check
      _
    $region19: #{lenet5_forward.5} parent=1 // pred_check_branch
      %22 = sbr.rel (0) target = $region21
    $region20: #{lenet5_forward.5} parent=1 // pred_region
      _
    $region21: #{lenet5_forward.5} parent=1 // pred_fallthru
      _
    // Predicated region
    $region22: #{lenet5_forward.5} parent=1 // pred_check
      _
    $region23: #{lenet5_forward.5} parent=1 // pred_check_branch
      %24 = sbr.rel (0) target = $region25
    $region24: #{lenet5_forward.5} parent=1 // pred_region
      _
    $region25: #{lenet5_forward.5} parent=1 // pred_fallthru
      _
    // Predicated region
    $region26: #{lenet5_forward.5} parent=1 // pred_check
      _
    $region27: #{lenet5_forward.5} parent=1 // pred_check_branch
      %26 = sbr.rel (0) target = $region29
    $region28: #{lenet5_forward.5} parent=1 // pred_region
      _
    $region29: #{lenet5_forward.5} parent=1 // pred_fallthru
      _
    %v27 = vld [vmem:[%s0] sm:$0xf]
    %v28 = vld [vmem:[%s1] sm:$0xf]
    %v29 = vld [vmem:[%s1 + $0x4] sm:$0xf]
    %v30 = vld [vmem:[%s1 + $0x8] sm:$0xf]
    %v31 = vld [vmem:[%s1 + $0xc] sm:$0xf]
    %v32 = vld [vmem:[%s1 + $0x10] sm:$0xf]
    %v33 = vld [vmem:[%s1 + $0x14] sm:$0xf]
    %v34 = vld [vmem:[%s1 + $0x18] sm:$0xf]
    %v35 = vld [vmem:[%s1 + $0x1c] sm:$0xf]
    %v36 = vld [vmem:[%s1 + $0x20] sm:$0xf]
    %v37 = vld [vmem:[%s1 + $0x24] sm:$0xf]
    %v38 = vld [vmem:[%s1 + $0x28] sm:$0xf]
    %v39 = vld [vmem:[%s1 + $0x2c] sm:$0xf]
    %v40 = vld [vmem:[%s1 + $0x30] sm:$0xf]
    %v41 = vld [vmem:[%s1 + $0x34] sm:$0xf]
    %v42 = vld [vmem:[%s1 + $0x38] sm:$0xf]
    %v43 = vld [vmem:[%s1 + $0x3c] sm:$0xf]
    %v44 = vld [vmem:[%s1 + $0x40] sm:$0xf]
    %v45 = vld [vmem:[%s1 + $0x44] sm:$0xf]
    %v46 = vld [vmem:[%s1 + $0x48] sm:$0xf]
    %v47 = vld [vmem:[%s1 + $0x4c] sm:$0xf]
    %v48 = vld [vmem:[%s1 + $0x50] sm:$0xf]
    %v49 = vld [vmem:[%s1 + $0x54] sm:$0xf]
    %v50 = vld [vmem:[%s1 + $0x58] sm:$0xf]
    %v51 = vld [vmem:[%s1 + $0x5c] sm:$0xf]
    %v52 = vld [vmem:[%s1 + $0x60] sm:$0xf]
    %v53 = vld [vmem:[%s1 + $0x64] sm:$0xf]
    %v54 = vld [vmem:[%s1 + $0x68] sm:$0xf]
    %v55 = vld [vmem:[%s1 + $0x6c] sm:$0xf]
    %v56 = vld [vmem:[%s1 + $0x70] sm:$0xf]
    %v57 = vld [vmem:[%s1 + $0x74] sm:$0xf]
    %v58 = vld [vmem:[%s1 + $0x78] sm:$0xf]
    %v59 = vld [vmem:[%s1 + $0x7c] sm:$0xf]
    %v60 = vld [vmem:[%s1 + $0x80] sm:$0xf]
    %v61 = vld [vmem:[%s1 + $0x84] sm:$0xf]
    %v62 = vld [vmem:[%s1 + $0x88] sm:$0xf]
    %v63 = vld [vmem:[%s1 + $0x8c] sm:$0xf]
    %v64 = vld [vmem:[%s1 + $0x90] sm:$0xf]
    %v65 = vld [vmem:[%s1 + $0x94] sm:$0xf]
    %v66 = vld [vmem:[%s1 + $0x98] sm:$0xf]
    %v67 = vld [vmem:[%s1 + $0x9c] sm:$0xf]
    %v68 = vld [vmem:[%s1 + $0xa0] sm:$0xf]
    %v69 = vld [vmem:[%s1 + $0xa4] sm:$0xf]
    %v70 = vld [vmem:[%s1 + $0xa8] sm:$0xf]
    %v71 = vld [vmem:[%s1 + $0xac] sm:$0xf]
    %v72 = vld [vmem:[%s1 + $0xb0] sm:$0xf]
    %v73 = vld [vmem:[%s1 + $0xb4] sm:$0xf]
    %v74 = vld [vmem:[%s1 + $0xb8] sm:$0xf]
    %v75 = vld [vmem:[%s1 + $0xbc] sm:$0xf]
    %v76 = vld [vmem:[%s1 + $0xc0] sm:$0xf]
    %v77 = vld [vmem:[%s1 + $0xc4] sm:$0xf]
    %v78 = vld [vmem:[%s1 + $0xc8] sm:$0xf]
    %v79 = vld [vmem:[%s1 + $0xcc] sm:$0xf]
    %v80 = vld [vmem:[%s1 + $0xd0] sm:$0xf]
    %v81 = vld [vmem:[%s1 + $0xd4] sm:$0xf]
    %v82 = vld [vmem:[%s1 + $0xd8] sm:$0xf]
    %v83 = vld [vmem:[%s1 + $0xdc] sm:$0xf]
    %v84 = vld [vmem:[%s1 + $0xe0] sm:$0xf]
    %v85 = vld [vmem:[%s1 + $0xe4] sm:$0xf]
    %v86 = vld [vmem:[%s1 + $0xe8] sm:$0xf]
    %v87 = vld [vmem:[%s1 + $0xec] sm:$0xf]
    %v88 = vld [vmem:[%s1 + $0xf0] sm:$0xf]
    %v89 = vld [vmem:[%s1 + $0xf4] sm:$0xf]
    %v90 = vld [vmem:[%s1 + $0xf8] sm:$0xf]
    %v91 = vld [vmem:[%s1 + $0xfc] sm:$0xf]
    %v92 = vld [vmem:[%s2] sm:$0x1]
    %v94 = vperm.slane %v92, 0
    %97 = vst [vmem:[#allocation1] ss:$9 sm:$0xff] %v27
    %v98 = vld [vmem:[#allocation1] sm:$0xff]
    %v99 = vld [vmem:[#allocation1 + $0x9] sm:$0xff]
    %v100 = vld [vmem:[#allocation1 + $0x12] sm:$0xff]
    %v101 = vld [vmem:[#allocation1 + $0x1b] sm:$0xff]
    %v170 = vunpack.c.l.b16 %v28
    %v171 = vunpack.c.l.b16 %v29
    %v172 = vunpack.c.l.b16 %v30
    %v173 = vunpack.c.l.b16 %v31
    %v174 = vunpack.c.l.b16 %v32
    %v175 = vunpack.c.l.b16 %v33
    %v176 = vunpack.c.l.b16 %v34
    %v177 = vunpack.c.l.b16 %v35
    %v178 = vunpack.c.l.b16 %v36
    %v179 = vunpack.c.l.b16 %v37
    %v180 = vunpack.c.l.b16 %v38
    %v181 = vunpack.c.l.b16 %v39
    %v182 = vunpack.c.l.b16 %v40
    %v183 = vunpack.c.l.b16 %v41
    %v184 = vunpack.c.l.b16 %v42
    %v185 = vunpack.c.l.b16 %v43
    %v186 = vunpack.c.l.b16 %v44
    %v187 = vunpack.c.l.b16 %v45
    %v188 = vunpack.c.l.b16 %v46
    %v189 = vunpack.c.l.b16 %v47
    %v190 = vunpack.c.l.b16 %v48
    %v191 = vunpack.c.l.b16 %v49
    %v192 = vunpack.c.l.b16 %v50
    %v193 = vunpack.c.l.b16 %v51
    %v194 = vunpack.c.l.b16 %v52
    %v195 = vunpack.c.l.b16 %v53
    %v196 = vunpack.c.l.b16 %v54
    %v197 = vunpack.c.l.b16 %v55
    %v198 = vunpack.c.l.b16 %v56
    %v199 = vunpack.c.l.b16 %v57
    %v200 = vunpack.c.l.b16 %v58
    %v201 = vunpack.c.l.b16 %v59
    %v202 = vunpack.c.l.b16 %v60
    %v203 = vunpack.c.l.b16 %v61
    %v204 = vunpack.c.l.b16 %v62
    %v205 = vunpack.c.l.b16 %v63
    %v206 = vunpack.c.l.b16 %v64
    %v207 = vunpack.c.l.b16 %v65
    %v208 = vunpack.c.l.b16 %v66
    %v209 = vunpack.c.l.b16 %v67
    %v210 = vunpack.c.l.b16 %v68
    %v211 = vunpack.c.l.b16 %v69
    %v212 = vunpack.c.l.b16 %v70
    %v213 = vunpack.c.l.b16 %v71
    %v214 = vunpack.c.l.b16 %v72
    %v215 = vunpack.c.l.b16 %v73
    %v216 = vunpack.c.l.b16 %v74
    %v217 = vunpack.c.l.b16 %v75
    %v218 = vunpack.c.l.b16 %v76
    %v219 = vunpack.c.l.b16 %v77
    %v220 = vunpack.c.l.b16 %v78
    %v221 = vunpack.c.l.b16 %v79
    %v222 = vunpack.c.l.b16 %v80
    %v223 = vunpack.c.l.b16 %v81
    %v224 = vunpack.c.l.b16 %v82
    %v225 = vunpack.c.l.b16 %v83
    %v226 = vunpack.c.l.b16 %v84
    %v227 = vunpack.c.l.b16 %v85
    %v228 = vunpack.c.l.b16 %v86
    %v229 = vunpack.c.l.b16 %v87
    %v230 = vunpack.c.l.b16 %v88
    %v231 = vunpack.c.l.b16 %v89
    %v232 = vunpack.c.l.b16 %v90
    %v233 = vunpack.c.l.b16 %v91
    %v234 = vpack.c.b16 %v171, %v170
    %v235 = vpack.c.b16 %v173, %v172
    %v236 = vpack.c.b16 %v175, %v174
    %v237 = vpack.c.b16 %v177, %v176
    %v238 = vpack.c.b16 %v179, %v178
    %v239 = vpack.c.b16 %v181, %v180
    %v240 = vpack.c.b16 %v183, %v182
    %v241 = vpack.c.b16 %v185, %v184
    %v242 = vpack.c.b16 %v187, %v186
    %v243 = vpack.c.b16 %v189, %v188
    %v244 = vpack.c.b16 %v191, %v190
    %v245 = vpack.c.b16 %v193, %v192
    %v246 = vpack.c.b16 %v195, %v194
    %v247 = vpack.c.b16 %v197, %v196
    %v248 = vpack.c.b16 %v199, %v198
    %v249 = vpack.c.b16 %v201, %v200
    %v250 = vpack.c.b16 %v203, %v202
    %v251 = vpack.c.b16 %v205, %v204
    %v252 = vpack.c.b16 %v207, %v206
    %v253 = vpack.c.b16 %v209, %v208
    %v254 = vpack.c.b16 %v211, %v210
    %v255 = vpack.c.b16 %v213, %v212
    %v256 = vpack.c.b16 %v215, %v214
    %v257 = vpack.c.b16 %v217, %v216
    %v258 = vpack.c.b16 %v219, %v218
    %v259 = vpack.c.b16 %v221, %v220
    %v260 = vpack.c.b16 %v223, %v222
    %v261 = vpack.c.b16 %v225, %v224
    %v262 = vpack.c.b16 %v227, %v226
    %v263 = vpack.c.b16 %v229, %v228
    %v264 = vpack.c.b16 %v231, %v230
    %v265 = vpack.c.b16 %v233, %v232
    %298 = vmatpush.bf16.msra.mxu0 %v241
    %299 = vmatpush.bf16.msra.mxu0 %v240
    %300 = vmatpush.bf16.msra.mxu0 %v239
    %301 = vmatpush.bf16.msra.mxu0 %v238
    %302 = vmatpush.bf16.msra.mxu0 %v237
    %303 = vmatpush.bf16.msra.mxu0 %v236
    %304 = vmatpush.bf16.msra.mxu0 %v235
    %305 = vmatpush.bf16.msra.mxu0 %v234
    %306 = vmatmul.bf16.gmra.mxu0 %v98
    %v307 = vpop.f32.mrf.mxu0
    %v308 = vadd.f32 %v94, %v307
    %v309 = vpop.f32.mrf.mxu0
    %310 = vdwg.mxu0
    %311 = vmatpush.bf16.msra.mxu0 %v249
    %312 = vmatpush.bf16.msra.mxu0 %v248
    %313 = vmatpush.bf16.msra.mxu0 %v247
    %314 = vmatpush.bf16.msra.mxu0 %v246
    %315 = vmatpush.bf16.msra.mxu0 %v245
    %316 = vmatpush.bf16.msra.mxu0 %v244
    %317 = vmatpush.bf16.msra.mxu0 %v243
    %318 = vmatpush.bf16.msra.mxu0 %v242
    %319 = vmatmul.bf16.gmra.mxu0 %v99
    %v320 = vpop.f32.mrf.mxu0
    %v321 = vadd.f32 %v308, %v320
    %v322 = vpop.f32.mrf.mxu0
    %323 = vdwg.mxu0
    %324 = vmatpush.bf16.msra.mxu0 %v257
    %325 = vmatpush.bf16.msra.mxu0 %v256
    %326 = vmatpush.bf16.msra.mxu0 %v255
    %327 = vmatpush.bf16.msra.mxu0 %v254
    %328 = vmatpush.bf16.msra.mxu0 %v253
    %329 = vmatpush.bf16.msra.mxu0 %v252
    %330 = vmatpush.bf16.msra.mxu0 %v251
    %331 = vmatpush.bf16.msra.mxu0 %v250
    %332 = vmatmul.bf16.gmra.mxu0 %v100
    %v333 = vpop.f32.mrf.mxu0
    %v334 = vadd.f32 %v321, %v333
    %v335 = vpop.f32.mrf.mxu0
    %336 = vdwg.mxu0
    %337 = vmatpush.bf16.msra.mxu0 %v265
    %338 = vmatpush.bf16.msra.mxu0 %v264
    %339 = vmatpush.bf16.msra.mxu0 %v263
    %340 = vmatpush.bf16.msra.mxu0 %v262
    %341 = vmatpush.bf16.msra.mxu0 %v261
    %342 = vmatpush.bf16.msra.mxu0 %v260
    %343 = vmatpush.bf16.msra.mxu0 %v259
    %344 = vmatpush.bf16.msra.mxu0 %v258
    %345 = vmatmul.bf16.gmra.mxu0 %v101
    %v346 = vpop.f32.mrf.mxu0
    %v347 = vadd.f32 %v334, %v346
    %v348 = vpop.f32.mrf.mxu0
    %349 = vdwg.mxu0
    %v350 = vmax.f32 %v347, 0.0
    %v351 = vpack.c.bf16 %v350, %v350
    %v352 = vld [vmem:[%s3] sm:$0xf]
    %v353 = vld [vmem:[%s3 + $0x4] sm:$0xf]
    %v354 = vld [vmem:[%s3 + $0x8] sm:$0xf]
    %v355 = vld [vmem:[%s3 + $0xc] sm:$0xf]
    %v356 = vld [vmem:[%s3 + $0x10] sm:$0xf]
    %v357 = vld [vmem:[%s3 + $0x14] sm:$0xf]
    %v358 = vld [vmem:[%s3 + $0x18] sm:$0xf]
    %v359 = vld [vmem:[%s3 + $0x1c] sm:$0xf]
    %v360 = vld [vmem:[%s3 + $0x20] sm:$0xf]
    %v361 = vld [vmem:[%s3 + $0x24] sm:$0xf]
    %v362 = vld [vmem:[%s3 + $0x28] sm:$0xf]
    %v363 = vld [vmem:[%s3 + $0x2c] sm:$0xf]
    %v364 = vld [vmem:[%s3 + $0x30] sm:$0xf]
    %v365 = vld [vmem:[%s3 + $0x34] sm:$0xf]
    %v366 = vld [vmem:[%s3 + $0x38] sm:$0xf]
    %v367 = vld [vmem:[%s3 + $0x3c] sm:$0xf]
    %v368 = vld [vmem:[%s4] sm:$0x1]
    %v370 = vperm.slane %v368, 0
    %v388 = vunpack.c.l.b16 %v352
    %v389 = vunpack.c.l.b16 %v353
    %v390 = vunpack.c.l.b16 %v354
    %v391 = vunpack.c.l.b16 %v355
    %v392 = vunpack.c.l.b16 %v356
    %v393 = vunpack.c.l.b16 %v357
    %v394 = vunpack.c.l.b16 %v358
    %v395 = vunpack.c.l.b16 %v359
    %v396 = vunpack.c.l.b16 %v360
    %v397 = vunpack.c.l.b16 %v361
    %v398 = vunpack.c.l.b16 %v362
    %v399 = vunpack.c.l.b16 %v363
    %v400 = vunpack.c.l.b16 %v364
    %v401 = vunpack.c.l.b16 %v365
    %v402 = vunpack.c.l.b16 %v366
    %v403 = vunpack.c.l.b16 %v367
    %v404 = vpack.c.b16 %v389, %v388
    %v405 = vpack.c.b16 %v391, %v390
    %v406 = vpack.c.b16 %v393, %v392
    %v407 = vpack.c.b16 %v395, %v394
    %v408 = vpack.c.b16 %v397, %v396
    %v409 = vpack.c.b16 %v399, %v398
    %v410 = vpack.c.b16 %v401, %v400
    %v411 = vpack.c.b16 %v403, %v402
    %420 = vmatpush.bf16.msra.mxu0 %v411
    %421 = vmatpush.bf16.msra.mxu0 %v410
    %422 = vmatpush.bf16.msra.mxu0 %v409
    %423 = vmatpush.bf16.msra.mxu0 %v408
    %424 = vmatpush.bf16.msra.mxu0 %v407
    %425 = vmatpush.bf16.msra.mxu0 %v406
    %426 = vmatpush.bf16.msra.mxu0 %v405
    %427 = vmatpush.bf16.msra.mxu0 %v404
    %428 = vmatmul.bf16.gmra.mxu0 %v351
    %v429 = vpop.f32.mrf.mxu0
    %v430 = vadd.f32 %v370, %v429
    %v431 = vpop.f32.mrf.mxu0
    %432 = vdwg.mxu0
    %v433 = vmax.f32 %v430, 0.0
    %v434 = vpack.c.bf16 %v433, %v433
    %v435 = vld [vmem:[%s5] sm:$0xf]
    %v436 = vld [vmem:[%s5 + $0x4] sm:$0xf]
    %v437 = vld [vmem:[%s5 + $0x8] sm:$0xf]
    %v438 = vld [vmem:[%s5 + $0xc] sm:$0xf]
    %v439 = vld [vmem:[%s5 + $0x10] sm:$0xf]
    %v440 = vld [vmem:[%s5 + $0x14] sm:$0xf]
    %v441 = vld [vmem:[%s5 + $0x18] sm:$0xf]
    %v442 = vld [vmem:[%s5 + $0x1c] sm:$0xf]
    %v443 = vld [vmem:[%s5 + $0x20] sm:$0xf]
    %v444 = vld [vmem:[%s5 + $0x24] sm:$0xf]
    %v445 = vld [vmem:[%s5 + $0x28] sm:$0xf]
    %v446 = vld [vmem:[%s5 + $0x2c] sm:$0xf]
    %v447 = vld [vmem:[%s5 + $0x30] sm:$0xf]
    %v448 = vld [vmem:[%s5 + $0x34] sm:$0xf]
    %v449 = vld [vmem:[%s5 + $0x38] sm:$0xf]
    %v450 = vld [vmem:[%s5 + $0x3c] sm:$0xf]
    %v451 = vld [vmem:[%s6] sm:$0x1]
    %v453 = vperm.slane %v451, 0
    %v471 = vunpack.c.l.b16 %v435
    %v472 = vunpack.c.l.b16 %v436
    %v473 = vunpack.c.l.b16 %v437
    %v474 = vunpack.c.l.b16 %v438
    %v475 = vunpack.c.l.b16 %v439
    %v476 = vunpack.c.l.b16 %v440
    %v477 = vunpack.c.l.b16 %v441
    %v478 = vunpack.c.l.b16 %v442
    %v479 = vunpack.c.l.b16 %v443
    %v480 = vunpack.c.l.b16 %v444
    %v481 = vunpack.c.l.b16 %v445
    %v482 = vunpack.c.l.b16 %v446
    %v483 = vunpack.c.l.b16 %v447
    %v484 = vunpack.c.l.b16 %v448
    %v485 = vunpack.c.l.b16 %v449
    %v486 = vunpack.c.l.b16 %v450
    %v487 = vpack.c.b16 %v472, %v471
    %v488 = vpack.c.b16 %v474, %v473
    %v489 = vpack.c.b16 %v476, %v475
    %v490 = vpack.c.b16 %v478, %v477
    %v491 = vpack.c.b16 %v480, %v479
    %v492 = vpack.c.b16 %v482, %v481
    %v493 = vpack.c.b16 %v484, %v483
    %v494 = vpack.c.b16 %v486, %v485
    %503 = vmatpush.bf16.msra.mxu0 %v494
    %504 = vmatpush.bf16.msra.mxu0 %v493
    %505 = vmatpush.bf16.msra.mxu0 %v492
    %506 = vmatpush.bf16.msra.mxu0 %v491
    %507 = vmatpush.bf16.msra.mxu0 %v490
    %508 = vmatpush.bf16.msra.mxu0 %v489
    %509 = vmatpush.bf16.msra.mxu0 %v488
    %510 = vmatpush.bf16.msra.mxu0 %v487
    %511 = vmatmul.bf16.gmra.mxu0 %v434
    %v512 = vpop.f32.mrf.mxu0
    %v513 = vadd.f32 %v453, %v512
    %v514 = vpop.f32.mrf.mxu0
    %515 = vdwg.mxu0
    %vm516 = vcmask 1041408
    %v517 = vsel %vm516, %v513, -inf
    %518 = vmax.xlane.f32.xlu0 %v517
    %v519 = vpop.xlane.xlu0 %518
    %v520 = vsub.f32 %v513, %v519
    %v521 = vmul.f32 %v520, 1.442695
    %v522 = vpow.pop %v521
    %v523 = vsel %vm516, %v522, 0.0
    %524 = vadd.xlane.f32.xlu0 %v523
    %v525 = vpop.xlane.xlu0 %524
    %v526 = vrcp.pop %v525
    %v527 = vmul.f32 %v522, %v526
    %528 = vst [vmem:[#allocation2] sm:$0x3] %v527
    // Predicated region
    $region30: #{lenet5_forward.5} parent=1 // pred_check
      _
    $region31: #{lenet5_forward.5} parent=1 // pred_check_branch
      %530 = sbr.rel (0) target = $region33
    $region32: #{lenet5_forward.5} parent=1 // pred_region
      %532 = vsyncadd [#allocation3], 0
      %s534 = sshll.u32 [#allocation2], 4
      %s535 = int_to_ptr.vmem [resolvable:$true] %s534
      %s536 = sshll.u32 %s7, 4
      %s537 = int_to_ptr.hbm [resolvable:$true] %s536
      %539 = dma.vmem_to_hbm [thread:$0]  %s535, 32, %s537, [#allocation3]
    $region33: #{lenet5_forward.5} parent=1 // pred_fallthru
      _
    // Predicated region
    $region34: #{lenet5_forward.5} parent=1 // pred_check
      _
    $region35: #{lenet5_forward.5} parent=1 // pred_check_branch
      %541 = sbr.rel (0) target = $region37
    $region36: #{lenet5_forward.5} parent=1 // pred_region
      %543 = dma.done [#allocation3], 32
    $region37: #{lenet5_forward.5} parent=1 // pred_fallthru
      _
    %544 = vsyncpa [#allocation3], 1

</llo_original>
